<compile_context>
chip_gen: v5e
topology: v5e:2x2
jax: 0.10.0
libtpu: 0.0.40
codegen_flags: <defaults>
</compile_context>

<pallas_src>
import functools

import jax
import jax.numpy as jnp
from jax.experimental import pallas as pl
from jax.experimental.pallas import tpu as pltpu


# Set to jnp.bfloat16 on v6e/v7x to halve DMA bytes of the dominant operand
# (review item 6).  Default f32 keeps the reference module's exact semantics.
MXU_DTYPE = None


def _conv3x3_bn_lrelu_kernel(x_ref, w_ref, shift_ref, o_ref, *, tile_h, out_w,
                             neg_slope):
    """One row-tile of: 3x3 conv (reflect-padded input) + folded BN + LeakyReLU.

    x_ref:     (1, H+2, W+2, Cin)  reflect-padded input; VMEM-resident for the
                                   whole image (index_map constant in the row
                                   tile axis -> DMA'd once per batch element).
    w_ref:     (9, Cin, Cout)      3x3 weights, tap-major, BN scale folded in.
    shift_ref: (1, Cout)           folded conv-bias + BN shift.
    o_ref:     (1, tile_h*W, Cout) one output row tile, flattened over (h, w).
    """
    r = pl.program_id(1)
    cin = x_ref.shape[3]
    npix = tile_h * out_w

    # Row band with a +1 halo row on each side: padded rows
    # [r*tile_h, r*tile_h + tile_h + 2).  Dynamic slice is on a dim above the
    # (sublane, lane) pair, so no alignment constraints.
    band = x_ref[0, pl.ds(r * tile_h, tile_h + 2), :, :]      # (tile_h+2, W+2, Cin)

    # 9 shifted taps read straight from the VMEM-resident band (review item 1:
    # no HBM im2col).  Each tap window (tile_h, W, Cin) is flattened to
    # (tile_h*W, Cin); with W % 8 == 0 this collapse of leading dims is a
    # layout-preserving no-op (lane dim = Cin is untouched).
    acc = None
    for ky in range(3):
        for kx in range(3):
            t = ky * 3 + kx
            win = band[ky:ky + tile_h, kx:kx + out_w, :]       # (tile_h, W, Cin)
            win = win.reshape(npix, cin)                       # (tile_h*W, Cin)
            part = jnp.dot(win, w_ref[t],
                           preferred_element_type=jnp.float32)
            acc = part if acc is None else acc + part
    # NOTE(perf, review item 5): kept as 9 accumulated MXU dots instead of one
    # K=9*Cin matmul -- fusing K needs a lane-dim concat/relayout of the taps,
    # and the MXU is nowhere near the bottleneck at these channel counts.
    # Revisit (single K=9*Cin dot) once channels are >= 64.

    acc = acc + shift_ref[...].astype(jnp.float32)   # conv bias + BN (folded)
    acc = jnp.where(acc > 0, acc, neg_slope * acc)   # LeakyReLU(0.01)
    # TODO(synk): train-mode Dropout2d(0.3) not implemented (eval = identity).
    o_ref[0] = acc.astype(o_ref.dtype)


def _pick_tile_h(h, w, max_pixels=2048):
    """Largest divisor of h whose row tile fits the pixel budget, preferring at
    least two row tiles so the pipeline has several steps (review item 3)."""
    divs = [t for t in range(1, h + 1) if h % t == 0]
    fitting = [t for t in divs if t * w <= max_pixels]
    if not fitting:
        return 1
    multi = [t for t in fitting if t < h]
    return max(multi) if multi else max(fitting)


def conv_bn_lrelu(x_nhwc, w_hwio, bias, gamma, beta, mean, var, *, eps=1e-5,
                  neg_slope=0.01):
    """Conv2d(3x3, reflect pad 1) + BatchNorm2d(eval) + Dropout2d(eval=id) + LeakyReLU."""
    n, h, w_, cin = x_nhwc.shape
    cout = w_hwio.shape[-1]
    assert w_ % 8 == 0, "W must be a multiple of 8 (sublane) for the in-kernel flatten"

    # Fold BN (inference) + conv bias (review item 7):
    #   y = scale*(conv(x, w) + b - mean) + beta = conv(x, w*scale) + shift
    scale = gamma / jnp.sqrt(var + eps)
    w_folded = (w_hwio * scale).reshape(9, cin, cout)
    shift = ((bias - mean) * scale + beta).reshape(1, cout)

    # Reflect pad ONCE; the kernel does the 9 shifted reads itself (item 1).
    xp = jnp.pad(x_nhwc, ((0, 0), (1, 1), (1, 1), (0, 0)), mode="reflect")
    if MXU_DTYPE is not None:
        xp = xp.astype(MXU_DTYPE)
        w_folded = w_folded.astype(MXU_DTYPE)

    tile_h = _pick_tile_h(h, w_)
    n_row_tiles = h // tile_h

    # Explicit VMEM budget (review item 4): v7x has 64 MiB physical / 32 MiB
    # default scoped VMEM; keep double-buffered blocks + temporaries inside it.
    isz = jnp.dtype(xp.dtype).itemsize
    osz = jnp.dtype(x_nhwc.dtype).itemsize
    blocks = ((h + 2) * (w_ + 2) * cin * isz            # resident padded image
              + 9 * cin * cout * isz + cout * 4         # weights + shift
              + tile_h * w_ * cout * osz)               # output row tile
    temps = ((tile_h + 2) * (w_ + 2) * cin * 4          # halo band
             + 10 * tile_h * w_ * max(cin, cout) * 4)   # taps + f32 accumulator
    vmem_limit = int(min(48 * 2 ** 20, max(32 * 2 ** 20, 2 * blocks + temps)))
    # TODO(synk): for very large images (padded image > ~16 MiB) switch the input
    # to memory_space=pl.ANY + manual double-buffered row-band make_async_copy
    # instead of keeping the whole padded image resident.

    kernel = functools.partial(_conv3x3_bn_lrelu_kernel, tile_h=tile_h,
                               out_w=w_, neg_slope=neg_slope)

    out_flat = pl.pallas_call(
        kernel,
        out_shape=jax.ShapeDtypeStruct((n, h * w_, cout), x_nhwc.dtype),
        grid_spec=pltpu.PrefetchScalarGridSpec(
            num_scalar_prefetch=0,
            grid=(n, n_row_tiles),
            in_specs=[
                # Whole padded image per batch element; index constant in r, so it
                # is fetched once per batch element and revisited by the row tiles.
                pl.BlockSpec((1, h + 2, w_ + 2, cin), lambda b, r: (b, 0, 0, 0)),
                pl.BlockSpec((9, cin, cout), lambda b, r: (0, 0, 0)),
                pl.BlockSpec((1, cout), lambda b, r: (0, 0)),
            ],
            out_specs=pl.BlockSpec((1, tile_h * w_, cout), lambda b, r: (b, r, 0)),
        ),
        compiler_params=pltpu.CompilerParams(
            dimension_semantics=("parallel", "arbitrary"),
            vmem_limit_bytes=vmem_limit,
        ),
    )(xp, w_folded, shift)

    return out_flat.reshape(n, h, w_, cout)


@jax.jit
def conv_block_forward(x_nchw, params):
    """Conv_Block forward (eval mode).  NCHW in / NCHW out, like PyTorch."""
    x = jnp.transpose(x_nchw, (0, 2, 3, 1))                  # NCHW -> NHWC
    y = conv_bn_lrelu(x, params["w1"], params["b1"], params["g1"],
                      params["be1"], params["m1"], params["v1"])
    # Intermediate stays NHWC: no transpose and no tap expansion between layers
    # (review item 8, minimum variant).
    # TODO(synk): fuse both conv+BN+LReLU layers into one pallas_call keeping the
    # intermediate row band in VMEM scratch (needs in-kernel reflect handling of
    # the intermediate at image borders) to save its HBM round trip.
    y = conv_bn_lrelu(y, params["w2"], params["b2"], params["g2"],
                      params["be2"], params["m2"], params["v2"])
    return jnp.transpose(y, (0, 3, 1, 2))                    # NHWC -> NCHW


# ---------------------------------------------------------------------------
# Parameters and a pure-JAX reference for correctness checking.
# ---------------------------------------------------------------------------

def init_conv_block_params(key, in_channel, out_channel, dtype=jnp.float32):
    ks = jax.random.split(key, 9)
    p = {}
    # Conv1 weights are HWIO (3, 3, Cin, Cout); bias enabled (bias='False' truthy).
    p["w1"] = 0.1 * jax.random.normal(ks[0], (3, 3, in_channel, out_channel), dtype)
    p["b1"] = 0.1 * jax.random.normal(ks[1], (out_channel,), dtype)
    p["g1"] = 1.0 + 0.1 * jax.random.normal(ks[2], (out_channel,), dtype)
    p["be1"] = 0.1 * jax.random.normal(ks[3], (out_channel,), dtype)
    p["m1"] = 0.05 * jax.random.normal(ks[4], (out_channel,), dtype)
    p["v1"] = 1.0 + 0.1 * jnp.abs(jax.random.normal(ks[5], (out_channel,), dtype))
    # Conv2 (bias=False).
    p["w2"] = 0.1 * jax.random.normal(ks[6], (3, 3, out_channel, out_channel), dtype)
    p["b2"] = jnp.zeros((out_channel,), dtype)
    p["g2"] = 1.0 + 0.1 * jax.random.normal(ks[7], (out_channel,), dtype)
    p["be2"] = 0.1 * jax.random.normal(ks[8], (out_channel,), dtype)
    p["m2"] = jnp.zeros((out_channel,), dtype)
    p["v2"] = jnp.ones((out_channel,), dtype)
    return p


def _ref_layer(x_nhwc, w, b, g, be, m, v, eps=1e-5):
    xp = jnp.pad(x_nhwc, ((0, 0), (1, 1), (1, 1), (0, 0)), mode="reflect")
    y = jax.lax.conv_general_dilated(
        xp, w, window_strides=(1, 1), padding="VALID",
        dimension_numbers=("NHWC", "HWIO", "NHWC")) + b
    y = (y - m) / jnp.sqrt(v + eps) * g + be
    return jnp.where(y > 0, y, 0.01 * y)


def conv_block_reference(x_nchw, p):
    x = jnp.transpose(x_nchw, (0, 2, 3, 1))
    y = _ref_layer(x, p["w1"], p["b1"], p["g1"], p["be1"], p["m1"], p["v1"])
    y = _ref_layer(y, p["w2"], p["b2"], p["g2"], p["be2"], p["m2"], p["v2"])
    return jnp.transpose(y, (0, 3, 1, 2))


if __name__ == "__main__":
    key = jax.random.PRNGKey(0)
    k_x, k_p = jax.random.split(key)

    N, Cin, Cout, H, W = 2, 4, 8, 16, 16
    x = jax.random.normal(k_x, (N, Cin, H, W), jnp.float32)
    params = init_conv_block_params(k_p, Cin, Cout)

    out = jax.block_until_ready(conv_block_forward(x, params))
    assert out.shape == (N, Cout, H, W), out.shape
    assert bool(jnp.isfinite(out).all())

    # Pure-JAX reference check (loose tolerance to accommodate MXU precision modes).
    ref = jax.block_until_ready(conv_block_reference(x, params))
    max_err = float(jnp.max(jnp.abs(out - ref)))
    assert max_err < 5e-2, f"max abs error vs reference: {max_err}"

    print("KERNEL_OK")
</pallas_src>

<mosaic_0001>
module attributes {stable_mosaic.version = 11 : i64} {
  func.func @_conv3x3_bn_lrelu_kernel(%arg0: i32, %arg1: i32, %arg2: memref<1x18x18x4xf32, #tpu.memory_space<vmem>>, %arg3: memref<9x4x8xf32, #tpu.memory_space<vmem>>, %arg4: memref<1x8xf32, #tpu.memory_space<vmem>>, %arg5: memref<1x128x8xf32, #tpu.memory_space<vmem>>) attributes {dimension_semantics = [#tpu.dimension_semantics<parallel>, #tpu.dimension_semantics<arbitrary>], iteration_bounds = array<i64: 2, 2>, scalar_prefetch = 0 : i64, scratch_operands = 0 : i64, tpu.core_type = #tpu.core_type<tc>, window_params = [{transform_indices = @transform_0, window_bounds = array<i64: 1, 18, 18, 4>}, {pipeline_mode = #tpu.pipeline_mode<synchronous>, transform_indices = @transform_1, window_bounds = array<i64: 9, 4, 8>}, {pipeline_mode = #tpu.pipeline_mode<synchronous>, transform_indices = @transform_2, window_bounds = array<i64: 1, 8>}, {transform_indices = @transform_3, window_bounds = array<i64: 1, 128, 8>}]} {
    %c8_i32 = arith.constant 8 : i32
    %0 = arith.muli %arg1, %c8_i32 : i32
    %c0 = arith.constant 0 : index
    %1 = arith.index_cast %0 : i32 to index
    %c0_0 = arith.constant 0 : index
    %c0_1 = arith.constant 0 : index
    %2 = vector.load %arg2[%c0, %1, %c0_0, %c0_1] : memref<1x18x18x4xf32, #tpu.memory_space<vmem>>, vector<1x10x18x4xf32>
    %3 = vector.shape_cast %2 : vector<1x10x18x4xf32> to vector<10x18x4xf32>
    %4 = vector.extract_strided_slice %3 {offsets = [0, 0, 0], sizes = [8, 16, 4], strides = [1, 1, 1]} : vector<10x18x4xf32> to vector<8x16x4xf32>
    %5 = vector.shape_cast %4 : vector<8x16x4xf32> to vector<128x4xf32>
    %c0_2 = arith.constant 0 : index
    %c0_3 = arith.constant 0 : index
    %c0_4 = arith.constant 0 : index
    %6 = vector.load %arg3[%c0_2, %c0_3, %c0_4] : memref<9x4x8xf32, #tpu.memory_space<vmem>>, vector<1x4x8xf32>
    %7 = vector.shape_cast %6 : vector<1x4x8xf32> to vector<4x8xf32>
    %cst = arith.constant dense<0.000000e+00> : vector<128x8xf32>
    %8 = tpu.matmul %5, %7, %cst {dimension_numbers = #tpu.dot_dimension_numbers<[1], [0], [0], [1], [0, 0, 1, 1], [], []>} : vector<128x4xf32>, vector<4x8xf32>, vector<128x8xf32> -> vector<128x8xf32>
    %9 = vector.extract_strided_slice %3 {offsets = [0, 1, 0], sizes = [8, 16, 4], strides = [1, 1, 1]} : vector<10x18x4xf32> to vector<8x16x4xf32>
    %10 = vector.shape_cast %9 : vector<8x16x4xf32> to vector<128x4xf32>
    %c1 = arith.constant 1 : index
    %c0_5 = arith.constant 0 : index
    %c0_6 = arith.constant 0 : index
    %11 = vector.load %arg3[%c1, %c0_5, %c0_6] : memref<9x4x8xf32, #tpu.memory_space<vmem>>, vector<1x4x8xf32>
    %12 = vector.shape_cast %11 : vector<1x4x8xf32> to vector<4x8xf32>
    %cst_7 = arith.constant dense<0.000000e+00> : vector<128x8xf32>
    %13 = tpu.matmul %10, %12, %cst_7 {dimension_numbers = #tpu.dot_dimension_numbers<[1], [0], [0], [1], [0, 0, 1, 1], [], []>} : vector<128x4xf32>, vector<4x8xf32>, vector<128x8xf32> -> vector<128x8xf32>
    %14 = arith.addf %8, %13 : vector<128x8xf32>
    %15 = vector.extract_strided_slice %3 {offsets = [0, 2, 0], sizes = [8, 16, 4], strides = [1, 1, 1]} : vector<10x18x4xf32> to vector<8x16x4xf32>
    %16 = vector.shape_cast %15 : vector<8x16x4xf32> to vector<128x4xf32>
    %c2 = arith.constant 2 : index
    %c0_8 = arith.constant 0 : index
    %c0_9 = arith.constant 0 : index
    %17 = vector.load %arg3[%c2, %c0_8, %c0_9] : memref<9x4x8xf32, #tpu.memory_space<vmem>>, vector<1x4x8xf32>
    %18 = vector.shape_cast %17 : vector<1x4x8xf32> to vector<4x8xf32>
    %cst_10 = arith.constant dense<0.000000e+00> : vector<128x8xf32>
    %19 = tpu.matmul %16, %18, %cst_10 {dimension_numbers = #tpu.dot_dimension_numbers<[1], [0], [0], [1], [0, 0, 1, 1], [], []>} : vector<128x4xf32>, vector<4x8xf32>, vector<128x8xf32> -> vector<128x8xf32>
    %20 = arith.addf %14, %19 : vector<128x8xf32>
    %21 = vector.extract_strided_slice %3 {offsets = [1, 0, 0], sizes = [8, 16, 4], strides = [1, 1, 1]} : vector<10x18x4xf32> to vector<8x16x4xf32>
    %22 = vector.shape_cast %21 : vector<8x16x4xf32> to vector<128x4xf32>
    %c3 = arith.constant 3 : index
    %c0_11 = arith.constant 0 : index
    %c0_12 = arith.constant 0 : index
    %23 = vector.load %arg3[%c3, %c0_11, %c0_12] : memref<9x4x8xf32, #tpu.memory_space<vmem>>, vector<1x4x8xf32>
    %24 = vector.shape_cast %23 : vector<1x4x8xf32> to vector<4x8xf32>
    %cst_13 = arith.constant dense<0.000000e+00> : vector<128x8xf32>
    %25 = tpu.matmul %22, %24, %cst_13 {dimension_numbers = #tpu.dot_dimension_numbers<[1], [0], [0], [1], [0, 0, 1, 1], [], []>} : vector<128x4xf32>, vector<4x8xf32>, vector<128x8xf32> -> vector<128x8xf32>
    %26 = arith.addf %20, %25 : vector<128x8xf32>
    %27 = vector.extract_strided_slice %3 {offsets = [1, 1, 0], sizes = [8, 16, 4], strides = [1, 1, 1]} : vector<10x18x4xf32> to vector<8x16x4xf32>
    %28 = vector.shape_cast %27 : vector<8x16x4xf32> to vector<128x4xf32>
    %c4 = arith.constant 4 : index
    %c0_14 = arith.constant 0 : index
    %c0_15 = arith.constant 0 : index
    %29 = vector.load %arg3[%c4, %c0_14, %c0_15] : memref<9x4x8xf32, #tpu.memory_space<vmem>>, vector<1x4x8xf32>
    %30 = vector.shape_cast %29 : vector<1x4x8xf32> to vector<4x8xf32>
    %cst_16 = arith.constant dense<0.000000e+00> : vector<128x8xf32>
    %31 = tpu.matmul %28, %30, %cst_16 {dimension_numbers = #tpu.dot_dimension_numbers<[1], [0], [0], [1], [0, 0, 1, 1], [], []>} : vector<128x4xf32>, vector<4x8xf32>, vector<128x8xf32> -> vector<128x8xf32>
    %32 = arith.addf %26, %31 : vector<128x8xf32>
    %33 = vector.extract_strided_slice %3 {offsets = [1, 2, 0], sizes = [8, 16, 4], strides = [1, 1, 1]} : vector<10x18x4xf32> to vector<8x16x4xf32>
    %34 = vector.shape_cast %33 : vector<8x16x4xf32> to vector<128x4xf32>
    %c5 = arith.constant 5 : index
    %c0_17 = arith.constant 0 : index
    %c0_18 = arith.constant 0 : index
    %35 = vector.load %arg3[%c5, %c0_17, %c0_18] : memref<9x4x8xf32, #tpu.memory_space<vmem>>, vector<1x4x8xf32>
    %36 = vector.shape_cast %35 : vector<1x4x8xf32> to vector<4x8xf32>
    %cst_19 = arith.constant dense<0.000000e+00> : vector<128x8xf32>
    %37 = tpu.matmul %34, %36, %cst_19 {dimension_numbers = #tpu.dot_dimension_numbers<[1], [0], [0], [1], [0, 0, 1, 1], [], []>} : vector<128x4xf32>, vector<4x8xf32>, vector<128x8xf32> -> vector<128x8xf32>
    %38 = arith.addf %32, %37 : vector<128x8xf32>
    %39 = vector.extract_strided_slice %3 {offsets = [2, 0, 0], sizes = [8, 16, 4], strides = [1, 1, 1]} : vector<10x18x4xf32> to vector<8x16x4xf32>
    %40 = vector.shape_cast %39 : vector<8x16x4xf32> to vector<128x4xf32>
    %c6 = arith.constant 6 : index
    %c0_20 = arith.constant 0 : index
    %c0_21 = arith.constant 0 : index
    %41 = vector.load %arg3[%c6, %c0_20, %c0_21] : memref<9x4x8xf32, #tpu.memory_space<vmem>>, vector<1x4x8xf32>
    %42 = vector.shape_cast %41 : vector<1x4x8xf32> to vector<4x8xf32>
    %cst_22 = arith.constant dense<0.000000e+00> : vector<128x8xf32>
    %43 = tpu.matmul %40, %42, %cst_22 {dimension_numbers = #tpu.dot_dimension_numbers<[1], [0], [0], [1], [0, 0, 1, 1], [], []>} : vector<128x4xf32>, vector<4x8xf32>, vector<128x8xf32> -> vector<128x8xf32>
    %44 = arith.addf %38, %43 : vector<128x8xf32>
    %45 = vector.extract_strided_slice %3 {offsets = [2, 1, 0], sizes = [8, 16, 4], strides = [1, 1, 1]} : vector<10x18x4xf32> to vector<8x16x4xf32>
    %46 = vector.shape_cast %45 : vector<8x16x4xf32> to vector<128x4xf32>
    %c7 = arith.constant 7 : index
    %c0_23 = arith.constant 0 : index
    %c0_24 = arith.constant 0 : index
    %47 = vector.load %arg3[%c7, %c0_23, %c0_24] : memref<9x4x8xf32, #tpu.memory_space<vmem>>, vector<1x4x8xf32>
    %48 = vector.shape_cast %47 : vector<1x4x8xf32> to vector<4x8xf32>
    %cst_25 = arith.constant dense<0.000000e+00> : vector<128x8xf32>
    %49 = tpu.matmul %46, %48, %cst_25 {dimension_numbers = #tpu.dot_dimension_numbers<[1], [0], [0], [1], [0, 0, 1, 1], [], []>} : vector<128x4xf32>, vector<4x8xf32>, vector<128x8xf32> -> vector<128x8xf32>
    %50 = arith.addf %44, %49 : vector<128x8xf32>
    %51 = vector.extract_strided_slice %3 {offsets = [2, 2, 0], sizes = [8, 16, 4], strides = [1, 1, 1]} : vector<10x18x4xf32> to vector<8x16x4xf32>
    %52 = vector.shape_cast %51 : vector<8x16x4xf32> to vector<128x4xf32>
    %c8 = arith.constant 8 : index
    %c0_26 = arith.constant 0 : index
    %c0_27 = arith.constant 0 : index
    %53 = vector.load %arg3[%c8, %c0_26, %c0_27] : memref<9x4x8xf32, #tpu.memory_space<vmem>>, vector<1x4x8xf32>
    %54 = vector.shape_cast %53 : vector<1x4x8xf32> to vector<4x8xf32>
    %cst_28 = arith.constant dense<0.000000e+00> : vector<128x8xf32>
    %55 = tpu.matmul %52, %54, %cst_28 {dimension_numbers = #tpu.dot_dimension_numbers<[1], [0], [0], [1], [0, 0, 1, 1], [], []>} : vector<128x4xf32>, vector<4x8xf32>, vector<128x8xf32> -> vector<128x8xf32>
    %56 = arith.addf %50, %55 : vector<128x8xf32>
    %c0_29 = arith.constant 0 : index
    %c0_30 = arith.constant 0 : index
    %57 = vector.load %arg4[%c0_29, %c0_30] : memref<1x8xf32, #tpu.memory_space<vmem>>, vector<1x8xf32>
    %58 = vector.broadcast %57 : vector<1x8xf32> to vector<128x8xf32>
    %59 = arith.addf %56, %58 : vector<128x8xf32>
    %cst_31 = arith.constant 0.000000e+00 : f32
    %60 = vector.broadcast %cst_31 : f32 to vector<128x8xf32>
    %61 = arith.cmpf ogt, %59, %60 : vector<128x8xf32>
    %cst_32 = arith.constant 0.00999999977 : f32
    %62 = vector.broadcast %cst_32 : f32 to vector<128x8xf32>
    %63 = arith.mulf %62, %59 : vector<128x8xf32>
    %64 = arith.select %61, %59, %63 : vector<128x8xi1>, vector<128x8xf32>
    %c0_33 = arith.constant 0 : index
    %c0_34 = arith.constant 0 : index
    %c0_35 = arith.constant 0 : index
    %65 = vector.load %arg5[%c0_33, %c0_34, %c0_35] : memref<1x128x8xf32, #tpu.memory_space<vmem>>, vector<1x128x8xf32>
    %66 = vector.shape_cast %65 : vector<1x128x8xf32> to vector<128x8xf32>
    %67 = vector.shape_cast %64 : vector<128x8xf32> to vector<1x128x8xf32>
    tpu.vector_store %arg5[%c0_33, %c0_34, %c0_35], %67 {strides = array<i32>} : memref<1x128x8xf32, #tpu.memory_space<vmem>>, vector<1x128x8xf32>,
    return
  }
  func.func @transform_0(%arg0: i32, %arg1: i32) -> (i32, i32, i32, i32) {
    %c0_i32 = arith.constant 0 : i32
    %c0_i32_0 = arith.constant 0 : i32
    %c0_i32_1 = arith.constant 0 : i32
    %c0_i32_2 = arith.constant 0 : i32
    return %arg0, %c0_i32, %c0_i32_0, %c0_i32_1 : i32, i32, i32, i32
  }
  func.func @transform_1(%arg0: i32, %arg1: i32) -> (i32, i32, i32) {
    %c0_i32 = arith.constant 0 : i32
    %c0_i32_0 = arith.constant 0 : i32
    %c0_i32_1 = arith.constant 0 : i32
    %c0_i32_2 = arith.constant 0 : i32
    return %c0_i32, %c0_i32_0, %c0_i32_1 : i32, i32, i32
  }
  func.func @transform_2(%arg0: i32, %arg1: i32) -> (i32, i32) {
    %c0_i32 = arith.constant 0 : i32
    %c0_i32_0 = arith.constant 0 : i32
    %c0_i32_1 = arith.constant 0 : i32
    return %c0_i32, %c0_i32_0 : i32, i32
  }
  func.func @transform_3(%arg0: i32, %arg1: i32) -> (i32, i32, i32) {
    %c0_i32 = arith.constant 0 : i32
    %c0_i32_0 = arith.constant 0 : i32
    return %arg0, %arg1, %c0_i32 : i32, i32, i32
  }
}

module attributes {stable_mosaic.version = 11 : i64} {
  func.func @_conv3x3_bn_lrelu_kernel(%arg0: i32, %arg1: i32, %arg2: memref<1x18x18x8xf32, #tpu.memory_space<vmem>>, %arg3: memref<9x8x8xf32, #tpu.memory_space<vmem>>, %arg4: memref<1x8xf32, #tpu.memory_space<vmem>>, %arg5: memref<1x128x8xf32, #tpu.memory_space<vmem>>) attributes {dimension_semantics = [#tpu.dimension_semantics<parallel>, #tpu.dimension_semantics<arbitrary>], iteration_bounds = array<i64: 2, 2>, scalar_prefetch = 0 : i64, scratch_operands = 0 : i64, tpu.core_type = #tpu.core_type<tc>, window_params = [{transform_indices = @transform_0, window_bounds = array<i64: 1, 18, 18, 8>}, {pipeline_mode = #tpu.pipeline_mode<synchronous>, transform_indices = @transform_1, window_bounds = array<i64: 9, 8, 8>}, {pipeline_mode = #tpu.pipeline_mode<synchronous>, transform_indices = @transform_2, window_bounds = array<i64: 1, 8>}, {transform_indices = @transform_3, window_bounds = array<i64: 1, 128, 8>}]} {
    %c8_i32 = arith.constant 8 : i32
    %0 = arith.muli %arg1, %c8_i32 : i32
    %c0 = arith.constant 0 : index
    %1 = arith.index_cast %0 : i32 to index
    %c0_0 = arith.constant 0 : index
    %c0_1 = arith.constant 0 : index
    %2 = vector.load %arg2[%c0, %1, %c0_0, %c0_1] : memref<1x18x18x8xf32, #tpu.memory_space<vmem>>, vector<1x10x18x8xf32>
    %3 = vector.shape_cast %2 : vector<1x10x18x8xf32> to vector<10x18x8xf32>
    %4 = vector.extract_strided_slice %3 {offsets = [0, 0, 0], sizes = [8, 16, 8], strides = [1, 1, 1]} : vector<10x18x8xf32> to vector<8x16x8xf32>
    %5 = vector.shape_cast %4 : vector<8x16x8xf32> to vector<128x8xf32>
    %c0_2 = arith.constant 0 : index
    %c0_3 = arith.constant 0 : index
    %c0_4 = arith.constant 0 : index
    %6 = vector.load %arg3[%c0_2, %c0_3, %c0_4] : memref<9x8x8xf32, #tpu.memory_space<vmem>>, vector<1x8x8xf32>
    %7 = vector.shape_cast %6 : vector<1x8x8xf32> to vector<8x8xf32>
    %cst = arith.constant dense<0.000000e+00> : vector<128x8xf32>
    %8 = tpu.matmul %5, %7, %cst {dimension_numbers = #tpu.dot_dimension_numbers<[1], [0], [0], [1], [0, 0, 1, 1], [], []>} : vector<128x8xf32>, vector<8x8xf32>, vector<128x8xf32> -> vector<128x8xf32>
    %9 = vector.extract_strided_slice %3 {offsets = [0, 1, 0], sizes = [8, 16, 8], strides = [1, 1, 1]} : vector<10x18x8xf32> to vector<8x16x8xf32>
    %10 = vector.shape_cast %9 : vector<8x16x8xf32> to vector<128x8xf32>
    %c1 = arith.constant 1 : index
    %c0_5 = arith.constant 0 : index
    %c0_6 = arith.constant 0 : index
    %11 = vector.load %arg3[%c1, %c0_5, %c0_6] : memref<9x8x8xf32, #tpu.memory_space<vmem>>, vector<1x8x8xf32>
    %12 = vector.shape_cast %11 : vector<1x8x8xf32> to vector<8x8xf32>
    %cst_7 = arith.constant dense<0.000000e+00> : vector<128x8xf32>
    %13 = tpu.matmul %10, %12, %cst_7 {dimension_numbers = #tpu.dot_dimension_numbers<[1], [0], [0], [1], [0, 0, 1, 1], [], []>} : vector<128x8xf32>, vector<8x8xf32>, vector<128x8xf32> -> vector<128x8xf32>
    %14 = arith.addf %8, %13 : vector<128x8xf32>
    %15 = vector.extract_strided_slice %3 {offsets = [0, 2, 0], sizes = [8, 16, 8], strides = [1, 1, 1]} : vector<10x18x8xf32> to vector<8x16x8xf32>
    %16 = vector.shape_cast %15 : vector<8x16x8xf32> to vector<128x8xf32>
    %c2 = arith.constant 2 : index
    %c0_8 = arith.constant 0 : index
    %c0_9 = arith.constant 0 : index
    %17 = vector.load %arg3[%c2, %c0_8, %c0_9] : memref<9x8x8xf32, #tpu.memory_space<vmem>>, vector<1x8x8xf32>
    %18 = vector.shape_cast %17 : vector<1x8x8xf32> to vector<8x8xf32>
    %cst_10 = arith.constant dense<0.000000e+00> : vector<128x8xf32>
    %19 = tpu.matmul %16, %18, %cst_10 {dimension_numbers = #tpu.dot_dimension_numbers<[1], [0], [0], [1], [0, 0, 1, 1], [], []>} : vector<128x8xf32>, vector<8x8xf32>, vector<128x8xf32> -> vector<128x8xf32>
    %20 = arith.addf %14, %19 : vector<128x8xf32>
    %21 = vector.extract_strided_slice %3 {offsets = [1, 0, 0], sizes = [8, 16, 8], strides = [1, 1, 1]} : vector<10x18x8xf32> to vector<8x16x8xf32>
    %22 = vector.shape_cast %21 : vector<8x16x8xf32> to vector<128x8xf32>
    %c3 = arith.constant 3 : index
    %c0_11 = arith.constant 0 : index
    %c0_12 = arith.constant 0 : index
    %23 = vector.load %arg3[%c3, %c0_11, %c0_12] : memref<9x8x8xf32, #tpu.memory_space<vmem>>, vector<1x8x8xf32>
    %24 = vector.shape_cast %23 : vector<1x8x8xf32> to vector<8x8xf32>
    %cst_13 = arith.constant dense<0.000000e+00> : vector<128x8xf32>
    %25 = tpu.matmul %22, %24, %cst_13 {dimension_numbers = #tpu.dot_dimension_numbers<[1], [0], [0], [1], [0, 0, 1, 1], [], []>} : vector<128x8xf32>, vector<8x8xf32>, vector<128x8xf32> -> vector<128x8xf32>
    %26 = arith.addf %20, %25 : vector<128x8xf32>
    %27 = vector.extract_strided_slice %3 {offsets = [1, 1, 0], sizes = [8, 16, 8], strides = [1, 1, 1]} : vector<10x18x8xf32> to vector<8x16x8xf32>
    %28 = vector.shape_cast %27 : vector<8x16x8xf32> to vector<128x8xf32>
    %c4 = arith.constant 4 : index
    %c0_14 = arith.constant 0 : index
    %c0_15 = arith.constant 0 : index
    %29 = vector.load %arg3[%c4, %c0_14, %c0_15] : memref<9x8x8xf32, #tpu.memory_space<vmem>>, vector<1x8x8xf32>
    %30 = vector.shape_cast %29 : vector<1x8x8xf32> to vector<8x8xf32>
    %cst_16 = arith.constant dense<0.000000e+00> : vector<128x8xf32>
    %31 = tpu.matmul %28, %30, %cst_16 {dimension_numbers = #tpu.dot_dimension_numbers<[1], [0], [0], [1], [0, 0, 1, 1], [], []>} : vector<128x8xf32>, vector<8x8xf32>, vector<128x8xf32> -> vector<128x8xf32>
    %32 = arith.addf %26, %31 : vector<128x8xf32>
    %33 = vector.extract_strided_slice %3 {offsets = [1, 2, 0], sizes = [8, 16, 8], strides = [1, 1, 1]} : vector<10x18x8xf32> to vector<8x16x8xf32>
    %34 = vector.shape_cast %33 : vector<8x16x8xf32> to vector<128x8xf32>
    %c5 = arith.constant 5 : index
    %c0_17 = arith.constant 0 : index
    %c0_18 = arith.constant 0 : index
    %35 = vector.load %arg3[%c5, %c0_17, %c0_18] : memref<9x8x8xf32, #tpu.memory_space<vmem>>, vector<1x8x8xf32>
    %36 = vector.shape_cast %35 : vector<1x8x8xf32> to vector<8x8xf32>
    %cst_19 = arith.constant dense<0.000000e+00> : vector<128x8xf32>
    %37 = tpu.matmul %34, %36, %cst_19 {dimension_numbers = #tpu.dot_dimension_numbers<[1], [0], [0], [1], [0, 0, 1, 1], [], []>} : vector<128x8xf32>, vector<8x8xf32>, vector<128x8xf32> -> vector<128x8xf32>
    %38 = arith.addf %32, %37 : vector<128x8xf32>
    %39 = vector.extract_strided_slice %3 {offsets = [2, 0, 0], sizes = [8, 16, 8], strides = [1, 1, 1]} : vector<10x18x8xf32> to vector<8x16x8xf32>
    %40 = vector.shape_cast %39 : vector<8x16x8xf32> to vector<128x8xf32>
    %c6 = arith.constant 6 : index
    %c0_20 = arith.constant 0 : index
    %c0_21 = arith.constant 0 : index
    %41 = vector.load %arg3[%c6, %c0_20, %c0_21] : memref<9x8x8xf32, #tpu.memory_space<vmem>>, vector<1x8x8xf32>
    %42 = vector.shape_cast %41 : vector<1x8x8xf32> to vector<8x8xf32>
    %cst_22 = arith.constant dense<0.000000e+00> : vector<128x8xf32>
    %43 = tpu.matmul %40, %42, %cst_22 {dimension_numbers = #tpu.dot_dimension_numbers<[1], [0], [0], [1], [0, 0, 1, 1], [], []>} : vector<128x8xf32>, vector<8x8xf32>, vector<128x8xf32> -> vector<128x8xf32>
    %44 = arith.addf %38, %43 : vector<128x8xf32>
    %45 = vector.extract_strided_slice %3 {offsets = [2, 1, 0], sizes = [8, 16, 8], strides = [1, 1, 1]} : vector<10x18x8xf32> to vector<8x16x8xf32>
    %46 = vector.shape_cast %45 : vector<8x16x8xf32> to vector<128x8xf32>
    %c7 = arith.constant 7 : index
    %c0_23 = arith.constant 0 : index
    %c0_24 = arith.constant 0 : index
    %47 = vector.load %arg3[%c7, %c0_23, %c0_24] : memref<9x8x8xf32, #tpu.memory_space<vmem>>, vector<1x8x8xf32>
    %48 = vector.shape_cast %47 : vector<1x8x8xf32> to vector<8x8xf32>
    %cst_25 = arith.constant dense<0.000000e+00> : vector<128x8xf32>
    %49 = tpu.matmul %46, %48, %cst_25 {dimension_numbers = #tpu.dot_dimension_numbers<[1], [0], [0], [1], [0, 0, 1, 1], [], []>} : vector<128x8xf32>, vector<8x8xf32>, vector<128x8xf32> -> vector<128x8xf32>
    %50 = arith.addf %44, %49 : vector<128x8xf32>
    %51 = vector.extract_strided_slice %3 {offsets = [2, 2, 0], sizes = [8, 16, 8], strides = [1, 1, 1]} : vector<10x18x8xf32> to vector<8x16x8xf32>
    %52 = vector.shape_cast %51 : vector<8x16x8xf32> to vector<128x8xf32>
    %c8 = arith.constant 8 : index
    %c0_26 = arith.constant 0 : index
    %c0_27 = arith.constant 0 : index
    %53 = vector.load %arg3[%c8, %c0_26, %c0_27] : memref<9x8x8xf32, #tpu.memory_space<vmem>>, vector<1x8x8xf32>
    %54 = vector.shape_cast %53 : vector<1x8x8xf32> to vector<8x8xf32>
    %cst_28 = arith.constant dense<0.000000e+00> : vector<128x8xf32>
    %55 = tpu.matmul %52, %54, %cst_28 {dimension_numbers = #tpu.dot_dimension_numbers<[1], [0], [0], [1], [0, 0, 1, 1], [], []>} : vector<128x8xf32>, vector<8x8xf32>, vector<128x8xf32> -> vector<128x8xf32>
    %56 = arith.addf %50, %55 : vector<128x8xf32>
    %c0_29 = arith.constant 0 : index
    %c0_30 = arith.constant 0 : index
    %57 = vector.load %arg4[%c0_29, %c0_30] : memref<1x8xf32, #tpu.memory_space<vmem>>, vector<1x8xf32>
    %58 = vector.broadcast %57 : vector<1x8xf32> to vector<128x8xf32>
    %59 = arith.addf %56, %58 : vector<128x8xf32>
    %cst_31 = arith.constant 0.000000e+00 : f32
    %60 = vector.broadcast %cst_31 : f32 to vector<128x8xf32>
    %61 = arith.cmpf ogt, %59, %60 : vector<128x8xf32>
    %cst_32 = arith.constant 0.00999999977 : f32
    %62 = vector.broadcast %cst_32 : f32 to vector<128x8xf32>
    %63 = arith.mulf %62, %59 : vector<128x8xf32>
    %64 = arith.select %61, %59, %63 : vector<128x8xi1>, vector<128x8xf32>
    %c0_33 = arith.constant 0 : index
    %c0_34 = arith.constant 0 : index
    %c0_35 = arith.constant 0 : index
    %65 = vector.load %arg5[%c0_33, %c0_34, %c0_35] : memref<1x128x8xf32, #tpu.memory_space<vmem>>, vector<1x128x8xf32>
    %66 = vector.shape_cast %65 : vector<1x128x8xf32> to vector<128x8xf32>
    %67 = vector.shape_cast %64 : vector<128x8xf32> to vector<1x128x8xf32>
    tpu.vector_store %arg5[%c0_33, %c0_34, %c0_35], %67 {strides = array<i32>} : memref<1x128x8xf32, #tpu.memory_space<vmem>>, vector<1x128x8xf32>,
    return
  }
  func.func @transform_0(%arg0: i32, %arg1: i32) -> (i32, i32, i32, i32) {
    %c0_i32 = arith.constant 0 : i32
    %c0_i32_0 = arith.constant 0 : i32
    %c0_i32_1 = arith.constant 0 : i32
    %c0_i32_2 = arith.constant 0 : i32
    return %arg0, %c0_i32, %c0_i32_0, %c0_i32_1 : i32, i32, i32, i32
  }
  func.func @transform_1(%arg0: i32, %arg1: i32) -> (i32, i32, i32) {
    %c0_i32 = arith.constant 0 : i32
    %c0_i32_0 = arith.constant 0 : i32
    %c0_i32_1 = arith.constant 0 : i32
    %c0_i32_2 = arith.constant 0 : i32
    return %c0_i32, %c0_i32_0, %c0_i32_1 : i32, i32, i32
  }
  func.func @transform_2(%arg0: i32, %arg1: i32) -> (i32, i32) {
    %c0_i32 = arith.constant 0 : i32
    %c0_i32_0 = arith.constant 0 : i32
    %c0_i32_1 = arith.constant 0 : i32
    return %c0_i32, %c0_i32_0 : i32, i32
  }
  func.func @transform_3(%arg0: i32, %arg1: i32) -> (i32, i32, i32) {
    %c0_i32 = arith.constant 0 : i32
    %c0_i32_0 = arith.constant 0 : i32
    return %arg0, %arg1, %c0_i32 : i32, i32, i32
  }
}

</mosaic_0001>

<llo_original>
// kernel: conv_block_forward.3
$region0: #{conv_block_forward.3}
  #allocation0 [shape = 'u32[]', space=smem, size = 0x4, offset = 0x4, fixed_abs, tag = 'smem constant byte address 0x4 - core index']
  #allocation1 [shape = 'u32[72,128]{1,0:T(1,128)}', space=vmem, size = 0x9000, scoped, tag = 'internal scratch']
  %s0 = inlined_call_operand.vmem [shape: f32[2,18,18,8], index: 0, kind: input, shape index: {}]
  %s1 = inlined_call_operand.vmem [shape: f32[9,8,8], index: 1, kind: input, shape index: {}]
  %s2 = inlined_call_operand.vmem [shape: f32[1,8], index: 2, kind: input, shape index: {}]
  %s3 = inlined_call_operand.vmem [shape: f32[2,256,8], index: 3, kind: output, shape index: {}]
  %s4 = sld [smem:[#allocation0]]
  $region45: #{conv_block_forward.3} parent=0
    _
  %s6 = ssub.s32 1, %s4
  %s7 = scalar_select 0, %s6, %s4
  loop: start=0, step=1, limit=6
  $region2: #{conv_block_forward.3} parent=0 // loop_pre_header
    _
  $region3: #{conv_block_forward.3} parent=0 // loop_header
    %s9 = sphi 0, %s13
    %p10 = scmp.ge.s32.totalorder %s9, 6
    %s16 = sphi 0, %s28
    %s17 = sphi 0, %s24
    %s18 = sphi 0, %s16
    %s19 = sphi 0, %s17
    %s20 = sphi 0, %s18
    %s21 = sphi 0, %s19
    %s31 = sphi 0, %s33
    %s34 = sphi 0, %s31
    %s35 = sphi 0, %s34
    %s51 = sphi 0, %s35
    %s55 = sphi 0, %s55
    %s57 = sphi 0, %s55
    %s58 = sphi 0, %s57
    %s72 = sphi 0, %s58
    %s76 = sphi 0, %s76
    %s78 = sphi 0, %s76
    %s79 = sphi 0, %s78
    %s93 = sphi 0, %s79
    %s101 = sphi 0, %s103
    %s104 = sphi 0, %s101
    %s105 = sphi 0, %s104
    %s121 = sphi 0, %s105
  $region4: #{conv_block_forward.3} parent=0 // loop_header_branch
    %12 = sbr.rel (%p10) target = $region8
  $region5: #{conv_block_forward.3} parent=0 // loop_body
    %s14 = ssub.s32 %s9, 1
    %s15 = ssub.s32 %s9, 2
    %s22 = sadd.s32 1, %s17
    %p23 = scmp.ge.s32.totalorder %s22, 2
    %s24 = scalar_select %p23, 0, %s22
    %s25 = sadd.s32 1, %s16
    %s26 = scalar_select %p23, %s25, %s16
    %p27 = scmp.ge.s32.totalorder %s26, 2
    %s28 = scalar_select %p27, 0, %s26
    %s29 = ssub.s32 %s16, %s28
    %p30 = scmp.eq.s32.totalorder %s29, 0
    %s32 = sadd.s32 %s31, 1
    %s33 = scalar_select %p30, %s31, %s32
    %p36 = pneg %p30
    %p37 = scmp.eq.s32.totalorder %s9, 3
    %p38 = por %p36, %p37
    %p39 = scmp.ne.s32.totalorder %s31, %s34
    %p40 = scmp.eq.s32.totalorder %s9, 0
    %p41 = por %p39, %p40
    %p42 = scmp.ne.s32.totalorder %s31, %s34
    %p43 = scmp.eq.s32.totalorder %s14, 3
    %p44 = por %p42, %p43
    %p45 = scmp.ne.s32.totalorder %s34, %s35
    %p46 = scmp.eq.s32.totalorder %s14, 0
    %p47 = por %p45, %p46
    %p48 = scmp.ne.s32.totalorder %s34, %s35
    %p49 = scmp.eq.s32.totalorder %s15, 3
    %p50 = por %p48, %p49
    %p52 = scmp.ne.s32.totalorder %s35, %s51
    %p53 = scmp.eq.s32.totalorder %s15, 0
    %p54 = por %p52, %p53
    %s56 = sadd.s32 %s55, 1
    %p59 = scmp.eq.s32.totalorder %s9, 3
    %p60 = scmp.ne.s32.totalorder %s55, %s57
    %p61 = scmp.eq.s32.totalorder %s9, 0
    %p62 = por %p60, %p61
    %p63 = scmp.ne.s32.totalorder %s55, %s57
    %p64 = scmp.eq.s32.totalorder %s14, 3
    %p65 = por %p63, %p64
    %p66 = scmp.ne.s32.totalorder %s57, %s58
    %p67 = scmp.eq.s32.totalorder %s14, 0
    %p68 = por %p66, %p67
    %p69 = scmp.ne.s32.totalorder %s57, %s58
    %p70 = scmp.eq.s32.totalorder %s15, 3
    %p71 = por %p69, %p70
    %p73 = scmp.ne.s32.totalorder %s58, %s72
    %p74 = scmp.eq.s32.totalorder %s15, 0
    %p75 = por %p73, %p74
    %s77 = sadd.s32 %s76, 1
    %p80 = scmp.eq.s32.totalorder %s9, 3
    %p81 = scmp.ne.s32.totalorder %s76, %s78
    %p82 = scmp.eq.s32.totalorder %s9, 0
    %p83 = por %p81, %p82
    %p84 = scmp.ne.s32.totalorder %s76, %s78
    %p85 = scmp.eq.s32.totalorder %s14, 3
    %p86 = por %p84, %p85
    %p87 = scmp.ne.s32.totalorder %s78, %s79
    %p88 = scmp.eq.s32.totalorder %s14, 0
    %p89 = por %p87, %p88
    %p90 = scmp.ne.s32.totalorder %s78, %s79
    %p91 = scmp.eq.s32.totalorder %s15, 3
    %p92 = por %p90, %p91
    %p94 = scmp.ne.s32.totalorder %s79, %s93
    %p95 = scmp.eq.s32.totalorder %s15, 0
    %p96 = por %p94, %p95
    %s97 = ssub.s32 %s16, %s28
    %s98 = ssub.s32 %s17, %s24
    %s99 = sor.u32 %s97, %s98
    %p100 = scmp.eq.s32.totalorder %s99, 0
    %s102 = sadd.s32 %s101, 1
    %s103 = scalar_select %p100, %s101, %s102
    %p106 = pneg %p100
    %p107 = scmp.eq.s32.totalorder %s9, 3
    %p108 = por %p106, %p107
    %p109 = scmp.ne.s32.totalorder %s101, %s104
    %p110 = scmp.eq.s32.totalorder %s9, 0
    %p111 = por %p109, %p110
    %p112 = scmp.ne.s32.totalorder %s101, %s104
    %p113 = scmp.eq.s32.totalorder %s14, 3
    %p114 = por %p112, %p113
    %p115 = scmp.ne.s32.totalorder %s104, %s105
    %p116 = scmp.eq.s32.totalorder %s14, 0
    %p117 = por %p115, %p116
    %p118 = scmp.ne.s32.totalorder %s104, %s105
    %p119 = scmp.eq.s32.totalorder %s15, 3
    %p120 = por %p118, %p119
    %p122 = scmp.ne.s32.totalorder %s105, %s121
    %p123 = scmp.eq.s32.totalorder %s15, 0
    %p124 = por %p122, %p123
    %p125 = scmp.le.s32.totalorder 1, %s9
    %p126 = scmp.lt.s32.totalorder %s9, 5
    %p127 = pnand %p125, %p126
    %p128 = pneg %p127
    // Predicated region
    $region9: #{conv_block_forward.3} parent=5 // pred_check
      _
    $region10: #{conv_block_forward.3} parent=5 // pred_check_branch
      %130 = sbr.rel (%p127) target = $region12
    $region11: #{conv_block_forward.3} parent=5 // pred_region
      %s131 = ssub.s32 %s9, 1
      // Predicated region
      $region13: #{conv_block_forward.3} parent=11 // pred_check
        %p132 = pneg %p68
      $region14: #{conv_block_forward.3} parent=11 // pred_check_branch
        %134 = sbr.rel (%p132) target = $region16
      $region15: #{conv_block_forward.3} parent=11 // pred_region
        _
      $region16: #{conv_block_forward.3} parent=11 // pred_fallthru
        _
      // Predicated region
      $region17: #{conv_block_forward.3} parent=11 // pred_check
        %p135 = pneg %p89
      $region18: #{conv_block_forward.3} parent=11 // pred_check_branch
        %137 = sbr.rel (%p135) target = $region20
      $region19: #{conv_block_forward.3} parent=11 // pred_region
        _
      $region20: #{conv_block_forward.3} parent=11 // pred_fallthru
        _
    $region12: #{conv_block_forward.3} parent=5 // pred_fallthru
      _
    %p138 = scmp.lt.s32.totalorder %s9, 4
    // Predicated region
    $region21: #{conv_block_forward.3} parent=5 // pred_check
      %p139 = pneg %p138
    $region22: #{conv_block_forward.3} parent=5 // pred_check_branch
      %141 = sbr.rel (%p139) target = $region24
    $region23: #{conv_block_forward.3} parent=5 // pred_region
      // Predicated region
      $region25: #{conv_block_forward.3} parent=23 // pred_check
        %p142 = pneg %p41
      $region26: #{conv_block_forward.3} parent=23 // pred_check_branch
        %144 = sbr.rel (%p142) target = $region28
      $region27: #{conv_block_forward.3} parent=23 // pred_region
        %p145 = scmp.lt.s32.totalorder %s16, 1
        %s146 = scalar_select %p145, %s16, 1
        %s147 = smul.addr %s146, 54
        %s148 = smul.addr %s147, 8
        %s149 = scalar_lea.vmem %s0, %s148
      $region28: #{conv_block_forward.3} parent=23 // pred_fallthru
        _
    $region24: #{conv_block_forward.3} parent=5 // pred_fallthru
      _
    %p150 = scmp.le.s32.totalorder 1, %s9
    %p151 = scmp.lt.s32.totalorder %s9, 5
    %p152 = pnand %p150, %p151
    %p153 = pneg %p152
    // Predicated region
    $region29: #{conv_block_forward.3} parent=5 // pred_check
      _
    $region30: #{conv_block_forward.3} parent=5 // pred_check_branch
      %155 = sbr.rel (%p152) target = $region32
    $region31: #{conv_block_forward.3} parent=5 // pred_region
      %s156 = ssub.s32 %s9, 1
      %p157 = scmp.lt.s32.totalorder %s18, 1
      %s158 = scalar_select %p157, %s18, 1
      %s159 = smul.addr %s158, 54
      %s160 = smul.addr %s159, 8
      %s161 = scalar_lea.vmem %s0, %s160
      %p162 = pneg %p47
      %p163 = pneg %p44
      %p164 = pneg %p68
      %p165 = pneg %p65
      %p166 = pneg %p89
      %p167 = pneg %p86
      %p168 = pneg %p117
      %p169 = pneg %p114
      %s170 = smul.u32 16, %s19
      %p171 = scmp.lt.s32.totalorder %s18, 1
      %s172 = scalar_select %p171, %s18, 1
      %p173 = scmp.lt.s32.totalorder %s170, 31
      %s174 = scalar_select %p173, %s170, 31
      %s175 = smul.addr %s172, 32
      %s176 = sadd.s32 %s174, %s175
      %s177 = smul.addr %s176, 8
      %s178 = scalar_lea.vmem %s3, %s177
      %p179 = scmp.lt.s32.totalorder %s18, 1
      %s180 = scalar_select %p179, %s18, 1
      %s181 = smul.addr %s180, 54
      %s182 = smul.addr %s181, 8
      %s183 = scalar_lea.vmem %s0, %s182
      %s184 = smul.u32 16, %s19
      %p185 = scmp.lt.s32.totalorder %s18, 1
      %s186 = scalar_select %p185, %s18, 1
      %p187 = scmp.lt.s32.totalorder %s184, 31
      %s188 = scalar_select %p187, %s184, 31
      %s189 = smul.addr %s186, 32
      %s190 = sadd.s32 %s188, %s189
      %s191 = smul.addr %s190, 8
      %s192 = scalar_lea.vmem %s3, %s191
      %s193 = smul.u32 16, %s19
      %s194 = smul.u32 %s19, 8
      %s195 = smul.u32 %s194, 24
      %s196 = scalar_lea.vmem %s183, %s195
      %v197 = vld [vmem:[%s196] sm:$0xff]
      %v198 = vld [vmem:[%s196 + $0x8] sm:$0xff]
      %v199 = vld [vmem:[%s196 + $0x10] sm:$0x3]
      %v200 = vld [vmem:[%s196 + $0x18] sm:$0xff]
      %v201 = vld [vmem:[%s196 + $0x20] sm:$0xff]
      %v202 = vld [vmem:[%s196 + $0x28] sm:$0x3]
      %v203 = vld [vmem:[%s196 + $0x30] sm:$0xff]
      %v204 = vld [vmem:[%s196 + $0x38] sm:$0xff]
      %v205 = vld [vmem:[%s196 + $0x40] sm:$0x3]
      %v206 = vld [vmem:[%s196 + $0x48] sm:$0xff]
      %v207 = vld [vmem:[%s196 + $0x50] sm:$0xff]
      %v208 = vld [vmem:[%s196 + $0x58] sm:$0x3]
      %v209 = vld [vmem:[%s196 + $0x60] sm:$0xff]
      %v210 = vld [vmem:[%s196 + $0x68] sm:$0xff]
      %v211 = vld [vmem:[%s196 + $0x70] sm:$0x3]
      %v212 = vld [vmem:[%s196 + $0x78] sm:$0xff]
      %v213 = vld [vmem:[%s196 + $0x80] sm:$0xff]
      %v214 = vld [vmem:[%s196 + $0x88] sm:$0x3]
      %v215 = vld [vmem:[%s196 + $0x90] sm:$0xff]
      %v216 = vld [vmem:[%s196 + $0x98] sm:$0xff]
      %v217 = vld [vmem:[%s196 + $0xa0] sm:$0x3]
      %v218 = vld [vmem:[%s196 + $0xa8] sm:$0xff]
      %v219 = vld [vmem:[%s196 + $0xb0] sm:$0xff]
      %v220 = vld [vmem:[%s196 + $0xb8] sm:$0x3]
      %v221 = vld [vmem:[%s196 + $0xc0] sm:$0xff]
      %v222 = vld [vmem:[%s196 + $0xc8] sm:$0xff]
      %v223 = vld [vmem:[%s196 + $0xd0] sm:$0x3]
      %v224 = vld [vmem:[%s196 + $0xd8] sm:$0xff]
      %v225 = vld [vmem:[%s196 + $0xe0] sm:$0xff]
      %v226 = vld [vmem:[%s196 + $0xe8] sm:$0x3]
      %v227 = vld [vmem:[%s1] sm:$0xff]
      %vm252 = vcmask 1046528
      %v253 = vrot.slane %v197, 1
      %v254 = vrot.slane %v198, 1
      %v255 = vsel %vm252, %v253, %v254
      %v256 = vrot.slane %v199, 1
      %v257 = vsel %vm252, %v254, %v256
      %v258 = vrot.slane %v200, 1
      %v259 = vrot.slane %v201, 1
      %v260 = vsel %vm252, %v258, %v259
      %v261 = vrot.slane %v202, 1
      %v262 = vsel %vm252, %v259, %v261
      %v263 = vrot.slane %v203, 1
      %v264 = vrot.slane %v204, 1
      %v265 = vsel %vm252, %v263, %v264
      %v266 = vrot.slane %v205, 1
      %v267 = vsel %vm252, %v264, %v266
      %v268 = vrot.slane %v206, 1
      %v269 = vrot.slane %v207, 1
      %v270 = vsel %vm252, %v268, %v269
      %v271 = vrot.slane %v208, 1
      %v272 = vsel %vm252, %v269, %v271
      %v273 = vrot.slane %v209, 1
      %v274 = vrot.slane %v210, 1
      %v275 = vsel %vm252, %v273, %v274
      %v276 = vrot.slane %v211, 1
      %v277 = vsel %vm252, %v274, %v276
      %v278 = vrot.slane %v212, 1
      %v279 = vrot.slane %v213, 1
      %v280 = vsel %vm252, %v278, %v279
      %v281 = vrot.slane %v214, 1
      %v282 = vsel %vm252, %v279, %v281
      %v283 = vrot.slane %v215, 1
      %v284 = vrot.slane %v216, 1
      %v285 = vsel %vm252, %v283, %v284
      %v286 = vrot.slane %v217, 1
      %v287 = vsel %vm252, %v284, %v286
      %v288 = vrot.slane %v218, 1
      %v289 = vrot.slane %v219, 1
      %v290 = vsel %vm252, %v288, %v289
      %v291 = vrot.slane %v220, 1
      %v292 = vsel %vm252, %v289, %v291
      %s293 = scalar_lea.vmem %s1, 8
      %v294 = vld [vmem:[%s293] sm:$0xff]
      %vm295 = vcmask 64512
      %v296 = vsel %vm295, %v255, 0
      %v298 = vsel %vm295, %v257, 0
      %v300 = vsel %vm295, %v260, 0
      %v302 = vsel %vm295, %v262, 0
      %v304 = vsel %vm295, %v265, 0
      %v306 = vsel %vm295, %v267, 0
      %v308 = vsel %vm295, %v270, 0
      %v310 = vsel %vm295, %v272, 0
      %v312 = vsel %vm295, %v275, 0
      %v314 = vsel %vm295, %v277, 0
      %v316 = vsel %vm295, %v280, 0
      %v318 = vsel %vm295, %v282, 0
      %v320 = vsel %vm295, %v285, 0
      %v322 = vsel %vm295, %v287, 0
      %v324 = vsel %vm295, %v290, 0
      %v326 = vsel %vm295, %v292, 0
      %328 = vmatpush.msra.mxu0 0.0
      %329 = vmatpush.msra.mxu0 0.0
      %330 = vmatpush.msra.mxu0 0.0
      %331 = vmatpush.msra.mxu0 0.0
      %332 = vmatpush.msra.mxu0 0.0
      %333 = vmatpush.msra.mxu0 0.0
      %334 = vmatpush.msra.mxu0 0.0
      %335 = vmatpush.msra.mxu0 0.0
      %336 = vmatpush.msra.mxu0 0.0
      %337 = vmatpush.msra.mxu0 0.0
      %338 = vmatpush.msra.mxu0 0.0
      %339 = vmatpush.msra.mxu0 0.0
      %340 = vmatpush.msra.mxu0 0.0
      %341 = vmatpush.msra.mxu0 0.0
      %342 = vmatpush.msra.mxu0 0.0
      %343 = vmatpush.msra.mxu0 %v294
      %344 = vmatmul.f32.gmra.mxu0 %v296
      %v345 = vpop.f32.mrf.mxu0
      %v346 = vadd.f32 0.0, %v345
      %347 = vmatmul.f32.gmra.mxu0 %v298
      %v348 = vpop.f32.mrf.mxu0
      %v349 = vadd.f32 0.0, %v348
      %350 = vmatmul.f32.gmra.mxu0 %v300
      %v351 = vpop.f32.mrf.mxu0
      %v352 = vadd.f32 0.0, %v351
      %353 = vmatmul.f32.gmra.mxu0 %v302
      %v354 = vpop.f32.mrf.mxu0
      %v355 = vadd.f32 0.0, %v354
      %356 = vmatmul.f32.gmra.mxu0 %v304
      %v357 = vpop.f32.mrf.mxu0
      %v358 = vadd.f32 0.0, %v357
      %359 = vmatmul.f32.gmra.mxu0 %v306
      %v360 = vpop.f32.mrf.mxu0
      %v361 = vadd.f32 0.0, %v360
      %362 = vmatmul.f32.gmra.mxu0 %v308
      %v363 = vpop.f32.mrf.mxu0
      %v364 = vadd.f32 0.0, %v363
      %365 = vmatmul.f32.gmra.mxu0 %v310
      %v366 = vpop.f32.mrf.mxu0
      %v367 = vadd.f32 0.0, %v366
      %368 = vmatmul.f32.gmra.mxu0 %v312
      %v369 = vpop.f32.mrf.mxu0
      %v370 = vadd.f32 0.0, %v369
      %371 = vmatmul.f32.gmra.mxu0 %v314
      %v372 = vpop.f32.mrf.mxu0
      %v373 = vadd.f32 0.0, %v372
      %374 = vmatmul.f32.gmra.mxu0 %v316
      %v375 = vpop.f32.mrf.mxu0
      %v376 = vadd.f32 0.0, %v375
      %377 = vmatmul.f32.gmra.mxu0 %v318
      %v378 = vpop.f32.mrf.mxu0
      %v379 = vadd.f32 0.0, %v378
      %380 = vmatmul.f32.gmra.mxu0 %v320
      %v381 = vpop.f32.mrf.mxu0
      %v382 = vadd.f32 0.0, %v381
      %383 = vmatmul.f32.gmra.mxu0 %v322
      %v384 = vpop.f32.mrf.mxu0
      %v385 = vadd.f32 0.0, %v384
      %386 = vmatmul.f32.gmra.mxu0 %v324
      %v387 = vpop.f32.mrf.mxu0
      %v388 = vadd.f32 0.0, %v387
      %389 = vmatmul.f32.gmra.mxu0 %v326
      %v390 = vpop.f32.mrf.mxu0
      %v391 = vadd.f32 0.0, %v390
      %392 = vdwg.mxu0
      %v393 = vsel %vm295, %v197, 0
      %v395 = vsel %vm295, %v198, 0
      %v397 = vsel %vm295, %v200, 0
      %v399 = vsel %vm295, %v201, 0
      %v401 = vsel %vm295, %v203, 0
      %v403 = vsel %vm295, %v204, 0
      %v405 = vsel %vm295, %v206, 0
      %v407 = vsel %vm295, %v207, 0
      %v409 = vsel %vm295, %v209, 0
      %v411 = vsel %vm295, %v210, 0
      %v413 = vsel %vm295, %v212, 0
      %v415 = vsel %vm295, %v213, 0
      %v417 = vsel %vm295, %v215, 0
      %v419 = vsel %vm295, %v216, 0
      %v421 = vsel %vm295, %v218, 0
      %v423 = vsel %vm295, %v219, 0
      %425 = vmatpush.msra.mxu0 0.0
      %426 = vmatpush.msra.mxu0 0.0
      %427 = vmatpush.msra.mxu0 0.0
      %428 = vmatpush.msra.mxu0 0.0
      %429 = vmatpush.msra.mxu0 0.0
      %430 = vmatpush.msra.mxu0 0.0
      %431 = vmatpush.msra.mxu0 0.0
      %432 = vmatpush.msra.mxu0 0.0
      %433 = vmatpush.msra.mxu0 0.0
      %434 = vmatpush.msra.mxu0 0.0
      %435 = vmatpush.msra.mxu0 0.0
      %436 = vmatpush.msra.mxu0 0.0
      %437 = vmatpush.msra.mxu0 0.0
      %438 = vmatpush.msra.mxu0 0.0
      %439 = vmatpush.msra.mxu0 0.0
      %440 = vmatpush.msra.mxu0 %v227
      %441 = vmatmul.f32.gmra.mxu0 %v393
      %v442 = vpop.f32.mrf.mxu0
      %v443 = vadd.f32 %v346, %v442
      %444 = vmatmul.f32.gmra.mxu0 %v395
      %v445 = vpop.f32.mrf.mxu0
      %v446 = vadd.f32 %v349, %v445
      %447 = vmatmul.f32.gmra.mxu0 %v397
      %v448 = vpop.f32.mrf.mxu0
      %v449 = vadd.f32 %v352, %v448
      %450 = vmatmul.f32.gmra.mxu0 %v399
      %v451 = vpop.f32.mrf.mxu0
      %v452 = vadd.f32 %v355, %v451
      %453 = vmatmul.f32.gmra.mxu0 %v401
      %v454 = vpop.f32.mrf.mxu0
      %v455 = vadd.f32 %v358, %v454
      %456 = vmatmul.f32.gmra.mxu0 %v403
      %v457 = vpop.f32.mrf.mxu0
      %v458 = vadd.f32 %v361, %v457
      %459 = vmatmul.f32.gmra.mxu0 %v405
      %v460 = vpop.f32.mrf.mxu0
      %v461 = vadd.f32 %v364, %v460
      %462 = vmatmul.f32.gmra.mxu0 %v407
      %v463 = vpop.f32.mrf.mxu0
      %v464 = vadd.f32 %v367, %v463
      %465 = vmatmul.f32.gmra.mxu0 %v409
      %v466 = vpop.f32.mrf.mxu0
      %v467 = vadd.f32 %v370, %v466
      %468 = vmatmul.f32.gmra.mxu0 %v411
      %v469 = vpop.f32.mrf.mxu0
      %v470 = vadd.f32 %v373, %v469
      %471 = vmatmul.f32.gmra.mxu0 %v413
      %v472 = vpop.f32.mrf.mxu0
      %v473 = vadd.f32 %v376, %v472
      %474 = vmatmul.f32.gmra.mxu0 %v415
      %v475 = vpop.f32.mrf.mxu0
      %v476 = vadd.f32 %v379, %v475
      %477 = vmatmul.f32.gmra.mxu0 %v417
      %v478 = vpop.f32.mrf.mxu0
      %v479 = vadd.f32 %v382, %v478
      %480 = vmatmul.f32.gmra.mxu0 %v419
      %v481 = vpop.f32.mrf.mxu0
      %v482 = vadd.f32 %v385, %v481
      %483 = vmatmul.f32.gmra.mxu0 %v421
      %v484 = vpop.f32.mrf.mxu0
      %v485 = vadd.f32 %v388, %v484
      %486 = vmatmul.f32.gmra.mxu0 %v423
      %v487 = vpop.f32.mrf.mxu0
      %v488 = vadd.f32 %v391, %v487
      %489 = vdwg.mxu0
      %vm490 = vcmask 1045504
      %v491 = vrot.slane %v197, 2
      %v492 = vrot.slane %v198, 2
      %v493 = vsel %vm490, %v491, %v492
      %v494 = vrot.slane %v199, 2
      %v495 = vsel %vm490, %v492, %v494
      %v496 = vrot.slane %v200, 2
      %v497 = vrot.slane %v201, 2
      %v498 = vsel %vm490, %v496, %v497
      %v499 = vrot.slane %v202, 2
      %v500 = vsel %vm490, %v497, %v499
      %v501 = vrot.slane %v203, 2
      %v502 = vrot.slane %v204, 2
      %v503 = vsel %vm490, %v501, %v502
      %v504 = vrot.slane %v205, 2
      %v505 = vsel %vm490, %v502, %v504
      %v506 = vrot.slane %v206, 2
      %v507 = vrot.slane %v207, 2
      %v508 = vsel %vm490, %v506, %v507
      %v509 = vrot.slane %v208, 2
      %v510 = vsel %vm490, %v507, %v509
      %v511 = vrot.slane %v209, 2
      %v512 = vrot.slane %v210, 2
      %v513 = vsel %vm490, %v511, %v512
      %v514 = vrot.slane %v211, 2
      %v515 = vsel %vm490, %v512, %v514
      %v516 = vrot.slane %v212, 2
      %v517 = vrot.slane %v213, 2
      %v518 = vsel %vm490, %v516, %v517
      %v519 = vrot.slane %v214, 2
      %v520 = vsel %vm490, %v517, %v519
      %v521 = vrot.slane %v215, 2
      %v522 = vrot.slane %v216, 2
      %v523 = vsel %vm490, %v521, %v522
      %v524 = vrot.slane %v217, 2
      %v525 = vsel %vm490, %v522, %v524
      %v526 = vrot.slane %v218, 2
      %v527 = vrot.slane %v219, 2
      %v528 = vsel %vm490, %v526, %v527
      %v529 = vrot.slane %v220, 2
      %v530 = vsel %vm490, %v527, %v529
      %s531 = scalar_lea.vmem %s1, 16
      %v532 = vld [vmem:[%s531] sm:$0xff]
      %v533 = vsel %vm295, %v493, 0
      %v535 = vsel %vm295, %v495, 0
      %v537 = vsel %vm295, %v498, 0
      %v539 = vsel %vm295, %v500, 0
      %v541 = vsel %vm295, %v503, 0
      %v543 = vsel %vm295, %v505, 0
      %v545 = vsel %vm295, %v508, 0
      %v547 = vsel %vm295, %v510, 0
      %v549 = vsel %vm295, %v513, 0
      %v551 = vsel %vm295, %v515, 0
      %v553 = vsel %vm295, %v518, 0
      %v555 = vsel %vm295, %v520, 0
      %v557 = vsel %vm295, %v523, 0
      %v559 = vsel %vm295, %v525, 0
      %v561 = vsel %vm295, %v528, 0
      %v563 = vsel %vm295, %v530, 0
      %565 = vmatpush.msra.mxu0 0.0
      %566 = vmatpush.msra.mxu0 0.0
      %567 = vmatpush.msra.mxu0 0.0
      %568 = vmatpush.msra.mxu0 0.0
      %569 = vmatpush.msra.mxu0 0.0
      %570 = vmatpush.msra.mxu0 0.0
      %571 = vmatpush.msra.mxu0 0.0
      %572 = vmatpush.msra.mxu0 0.0
      %573 = vmatpush.msra.mxu0 0.0
      %574 = vmatpush.msra.mxu0 0.0
      %575 = vmatpush.msra.mxu0 0.0
      %576 = vmatpush.msra.mxu0 0.0
      %577 = vmatpush.msra.mxu0 0.0
      %578 = vmatpush.msra.mxu0 0.0
      %579 = vmatpush.msra.mxu0 0.0
      %580 = vmatpush.msra.mxu0 %v532
      %581 = vmatmul.f32.gmra.mxu0 %v533
      %v582 = vpop.f32.mrf.mxu0
      %v583 = vadd.f32 0.0, %v582
      %584 = vmatmul.f32.gmra.mxu0 %v535
      %v585 = vpop.f32.mrf.mxu0
      %v586 = vadd.f32 0.0, %v585
      %587 = vmatmul.f32.gmra.mxu0 %v537
      %v588 = vpop.f32.mrf.mxu0
      %v589 = vadd.f32 0.0, %v588
      %590 = vmatmul.f32.gmra.mxu0 %v539
      %v591 = vpop.f32.mrf.mxu0
      %v592 = vadd.f32 0.0, %v591
      %593 = vmatmul.f32.gmra.mxu0 %v541
      %v594 = vpop.f32.mrf.mxu0
      %v595 = vadd.f32 0.0, %v594
      %596 = vmatmul.f32.gmra.mxu0 %v543
      %v597 = vpop.f32.mrf.mxu0
      %v598 = vadd.f32 0.0, %v597
      %599 = vmatmul.f32.gmra.mxu0 %v545
      %v600 = vpop.f32.mrf.mxu0
      %v601 = vadd.f32 0.0, %v600
      %602 = vmatmul.f32.gmra.mxu0 %v547
      %v603 = vpop.f32.mrf.mxu0
      %v604 = vadd.f32 0.0, %v603
      %605 = vmatmul.f32.gmra.mxu0 %v549
      %v606 = vpop.f32.mrf.mxu0
      %v607 = vadd.f32 0.0, %v606
      %608 = vmatmul.f32.gmra.mxu0 %v551
      %v609 = vpop.f32.mrf.mxu0
      %v610 = vadd.f32 0.0, %v609
      %611 = vmatmul.f32.gmra.mxu0 %v553
      %v612 = vpop.f32.mrf.mxu0
      %v613 = vadd.f32 0.0, %v612
      %614 = vmatmul.f32.gmra.mxu0 %v555
      %v615 = vpop.f32.mrf.mxu0
      %v616 = vadd.f32 0.0, %v615
      %617 = vmatmul.f32.gmra.mxu0 %v557
      %v618 = vpop.f32.mrf.mxu0
      %v619 = vadd.f32 0.0, %v618
      %620 = vmatmul.f32.gmra.mxu0 %v559
      %v621 = vpop.f32.mrf.mxu0
      %v622 = vadd.f32 0.0, %v621
      %623 = vmatmul.f32.gmra.mxu0 %v561
      %v624 = vpop.f32.mrf.mxu0
      %v625 = vadd.f32 0.0, %v624
      %626 = vmatmul.f32.gmra.mxu0 %v563
      %v627 = vpop.f32.mrf.mxu0
      %v628 = vadd.f32 0.0, %v627
      %629 = vdwg.mxu0
      %v630 = vadd.f32 %v443, %v583
      %v631 = vadd.f32 %v446, %v586
      %v632 = vadd.f32 %v449, %v589
      %v633 = vadd.f32 %v452, %v592
      %v634 = vadd.f32 %v455, %v595
      %v635 = vadd.f32 %v458, %v598
      %v636 = vadd.f32 %v461, %v601
      %v637 = vadd.f32 %v464, %v604
      %v638 = vadd.f32 %v467, %v607
      %v639 = vadd.f32 %v470, %v610
      %v640 = vadd.f32 %v473, %v613
      %v641 = vadd.f32 %v476, %v616
      %v642 = vadd.f32 %v479, %v619
      %v643 = vadd.f32 %v482, %v622
      %v644 = vadd.f32 %v485, %v625
      %v645 = vadd.f32 %v488, %v628
      %s646 = scalar_lea.vmem %s1, 24
      %v647 = vld [vmem:[%s646] sm:$0xff]
      %v649 = vsel %vm295, %v221, 0
      %v652 = vsel %vm295, %v222, 0
      %654 = vmatpush.msra.mxu0 0.0
      %655 = vmatpush.msra.mxu0 0.0
      %656 = vmatpush.msra.mxu0 0.0
      %657 = vmatpush.msra.mxu0 0.0
      %658 = vmatpush.msra.mxu0 0.0
      %659 = vmatpush.msra.mxu0 0.0
      %660 = vmatpush.msra.mxu0 0.0
      %661 = vmatpush.msra.mxu0 0.0
      %662 = vmatpush.msra.mxu0 0.0
      %663 = vmatpush.msra.mxu0 0.0
      %664 = vmatpush.msra.mxu0 0.0
      %665 = vmatpush.msra.mxu0 0.0
      %666 = vmatpush.msra.mxu0 0.0
      %667 = vmatpush.msra.mxu0 0.0
      %668 = vmatpush.msra.mxu0 0.0
      %669 = vmatpush.msra.mxu0 %v647
      %670 = vmatmul.f32.gmra.mxu0 %v397
      %v671 = vpop.f32.mrf.mxu0
      %v672 = vadd.f32 0.0, %v671
      %673 = vmatmul.f32.gmra.mxu0 %v399
      %v674 = vpop.f32.mrf.mxu0
      %v675 = vadd.f32 0.0, %v674
      %676 = vmatmul.f32.gmra.mxu0 %v401
      %v677 = vpop.f32.mrf.mxu0
      %v678 = vadd.f32 0.0, %v677
      %679 = vmatmul.f32.gmra.mxu0 %v403
      %v680 = vpop.f32.mrf.mxu0
      %v681 = vadd.f32 0.0, %v680
      %682 = vmatmul.f32.gmra.mxu0 %v405
      %v683 = vpop.f32.mrf.mxu0
      %v684 = vadd.f32 0.0, %v683
      %685 = vmatmul.f32.gmra.mxu0 %v407
      %v686 = vpop.f32.mrf.mxu0
      %v687 = vadd.f32 0.0, %v686
      %688 = vmatmul.f32.gmra.mxu0 %v409
      %v689 = vpop.f32.mrf.mxu0
      %v690 = vadd.f32 0.0, %v689
      %691 = vmatmul.f32.gmra.mxu0 %v411
      %v692 = vpop.f32.mrf.mxu0
      %v693 = vadd.f32 0.0, %v692
      %694 = vmatmul.f32.gmra.mxu0 %v413
      %v695 = vpop.f32.mrf.mxu0
      %v696 = vadd.f32 0.0, %v695
      %697 = vmatmul.f32.gmra.mxu0 %v415
      %v698 = vpop.f32.mrf.mxu0
      %v699 = vadd.f32 0.0, %v698
      %700 = vmatmul.f32.gmra.mxu0 %v417
      %v701 = vpop.f32.mrf.mxu0
      %v702 = vadd.f32 0.0, %v701
      %703 = vmatmul.f32.gmra.mxu0 %v419
      %v704 = vpop.f32.mrf.mxu0
      %v705 = vadd.f32 0.0, %v704
      %706 = vmatmul.f32.gmra.mxu0 %v421
      %v707 = vpop.f32.mrf.mxu0
      %v708 = vadd.f32 0.0, %v707
      %709 = vmatmul.f32.gmra.mxu0 %v423
      %v710 = vpop.f32.mrf.mxu0
      %v711 = vadd.f32 0.0, %v710
      %712 = vmatmul.f32.gmra.mxu0 %v649
      %v713 = vpop.f32.mrf.mxu0
      %v714 = vadd.f32 0.0, %v713
      %715 = vmatmul.f32.gmra.mxu0 %v652
      %v716 = vpop.f32.mrf.mxu0
      %v717 = vadd.f32 0.0, %v716
      %718 = vdwg.mxu0
      %v719 = vadd.f32 %v630, %v672
      %v720 = vadd.f32 %v631, %v675
      %v721 = vadd.f32 %v632, %v678
      %v722 = vadd.f32 %v633, %v681
      %v723 = vadd.f32 %v634, %v684
      %v724 = vadd.f32 %v635, %v687
      %v725 = vadd.f32 %v636, %v690
      %v726 = vadd.f32 %v637, %v693
      %v727 = vadd.f32 %v638, %v696
      %v728 = vadd.f32 %v639, %v699
      %v729 = vadd.f32 %v640, %v702
      %v730 = vadd.f32 %v641, %v705
      %v731 = vadd.f32 %v642, %v708
      %v732 = vadd.f32 %v643, %v711
      %v733 = vadd.f32 %v644, %v714
      %v734 = vadd.f32 %v645, %v717
      %v736 = vrot.slane %v221, 1
      %v737 = vrot.slane %v222, 1
      %v738 = vsel %vm252, %v736, %v737
      %v739 = vrot.slane %v223, 1
      %v740 = vsel %vm252, %v737, %v739
      %s741 = scalar_lea.vmem %s1, 32
      %v742 = vld [vmem:[%s741] sm:$0xff]
      %v743 = vsel %vm295, %v738, 0
      %v745 = vsel %vm295, %v740, 0
      %747 = vmatpush.msra.mxu0 0.0
      %748 = vmatpush.msra.mxu0 0.0
      %749 = vmatpush.msra.mxu0 0.0
      %750 = vmatpush.msra.mxu0 0.0
      %751 = vmatpush.msra.mxu0 0.0
      %752 = vmatpush.msra.mxu0 0.0
      %753 = vmatpush.msra.mxu0 0.0
      %754 = vmatpush.msra.mxu0 0.0
      %755 = vmatpush.msra.mxu0 0.0
      %756 = vmatpush.msra.mxu0 0.0
      %757 = vmatpush.msra.mxu0 0.0
      %758 = vmatpush.msra.mxu0 0.0
      %759 = vmatpush.msra.mxu0 0.0
      %760 = vmatpush.msra.mxu0 0.0
      %761 = vmatpush.msra.mxu0 0.0
      %762 = vmatpush.msra.mxu0 %v742
      %763 = vmatmul.f32.gmra.mxu0 %v300
      %v764 = vpop.f32.mrf.mxu0
      %v765 = vadd.f32 0.0, %v764
      %766 = vmatmul.f32.gmra.mxu0 %v302
      %v767 = vpop.f32.mrf.mxu0
      %v768 = vadd.f32 0.0, %v767
      %769 = vmatmul.f32.gmra.mxu0 %v304
      %v770 = vpop.f32.mrf.mxu0
      %v771 = vadd.f32 0.0, %v770
      %772 = vmatmul.f32.gmra.mxu0 %v306
      %v773 = vpop.f32.mrf.mxu0
      %v774 = vadd.f32 0.0, %v773
      %775 = vmatmul.f32.gmra.mxu0 %v308
      %v776 = vpop.f32.mrf.mxu0
      %v777 = vadd.f32 0.0, %v776
      %778 = vmatmul.f32.gmra.mxu0 %v310
      %v779 = vpop.f32.mrf.mxu0
      %v780 = vadd.f32 0.0, %v779
      %781 = vmatmul.f32.gmra.mxu0 %v312
      %v782 = vpop.f32.mrf.mxu0
      %v783 = vadd.f32 0.0, %v782
      %784 = vmatmul.f32.gmra.mxu0 %v314
      %v785 = vpop.f32.mrf.mxu0
      %v786 = vadd.f32 0.0, %v785
      %787 = vmatmul.f32.gmra.mxu0 %v316
      %v788 = vpop.f32.mrf.mxu0
      %v789 = vadd.f32 0.0, %v788
      %790 = vmatmul.f32.gmra.mxu0 %v318
      %v791 = vpop.f32.mrf.mxu0
      %v792 = vadd.f32 0.0, %v791
      %793 = vmatmul.f32.gmra.mxu0 %v320
      %v794 = vpop.f32.mrf.mxu0
      %v795 = vadd.f32 0.0, %v794
      %796 = vmatmul.f32.gmra.mxu0 %v322
      %v797 = vpop.f32.mrf.mxu0
      %v798 = vadd.f32 0.0, %v797
      %799 = vmatmul.f32.gmra.mxu0 %v324
      %v800 = vpop.f32.mrf.mxu0
      %v801 = vadd.f32 0.0, %v800
      %802 = vmatmul.f32.gmra.mxu0 %v326
      %v803 = vpop.f32.mrf.mxu0
      %v804 = vadd.f32 0.0, %v803
      %805 = vmatmul.f32.gmra.mxu0 %v743
      %v806 = vpop.f32.mrf.mxu0
      %v807 = vadd.f32 0.0, %v806
      %808 = vmatmul.f32.gmra.mxu0 %v745
      %v809 = vpop.f32.mrf.mxu0
      %v810 = vadd.f32 0.0, %v809
      %811 = vdwg.mxu0
      %v812 = vadd.f32 %v719, %v765
      %v813 = vadd.f32 %v720, %v768
      %v814 = vadd.f32 %v721, %v771
      %v815 = vadd.f32 %v722, %v774
      %v816 = vadd.f32 %v723, %v777
      %v817 = vadd.f32 %v724, %v780
      %v818 = vadd.f32 %v725, %v783
      %v819 = vadd.f32 %v726, %v786
      %v820 = vadd.f32 %v727, %v789
      %v821 = vadd.f32 %v728, %v792
      %v822 = vadd.f32 %v729, %v795
      %v823 = vadd.f32 %v730, %v798
      %v824 = vadd.f32 %v731, %v801
      %v825 = vadd.f32 %v732, %v804
      %v826 = vadd.f32 %v733, %v807
      %v827 = vadd.f32 %v734, %v810
      %v828 = vrot.slane %v221, 2
      %v829 = vrot.slane %v222, 2
      %v830 = vsel %vm490, %v828, %v829
      %v831 = vrot.slane %v223, 2
      %v832 = vsel %vm490, %v829, %v831
      %s833 = scalar_lea.vmem %s1, 40
      %v834 = vld [vmem:[%s833] sm:$0xff]
      %v835 = vsel %vm295, %v830, 0
      %v837 = vsel %vm295, %v832, 0
      %839 = vmatpush.msra.mxu0 0.0
      %840 = vmatpush.msra.mxu0 0.0
      %841 = vmatpush.msra.mxu0 0.0
      %842 = vmatpush.msra.mxu0 0.0
      %843 = vmatpush.msra.mxu0 0.0
      %844 = vmatpush.msra.mxu0 0.0
      %845 = vmatpush.msra.mxu0 0.0
      %846 = vmatpush.msra.mxu0 0.0
      %847 = vmatpush.msra.mxu0 0.0
      %848 = vmatpush.msra.mxu0 0.0
      %849 = vmatpush.msra.mxu0 0.0
      %850 = vmatpush.msra.mxu0 0.0
      %851 = vmatpush.msra.mxu0 0.0
      %852 = vmatpush.msra.mxu0 0.0
      %853 = vmatpush.msra.mxu0 0.0
      %854 = vmatpush.msra.mxu0 %v834
      %855 = vmatmul.f32.gmra.mxu0 %v537
      %v856 = vpop.f32.mrf.mxu0
      %v857 = vadd.f32 0.0, %v856
      %858 = vmatmul.f32.gmra.mxu0 %v539
      %v859 = vpop.f32.mrf.mxu0
      %v860 = vadd.f32 0.0, %v859
      %861 = vmatmul.f32.gmra.mxu0 %v541
      %v862 = vpop.f32.mrf.mxu0
      %v863 = vadd.f32 0.0, %v862
      %864 = vmatmul.f32.gmra.mxu0 %v543
      %v865 = vpop.f32.mrf.mxu0
      %v866 = vadd.f32 0.0, %v865
      %867 = vmatmul.f32.gmra.mxu0 %v545
      %v868 = vpop.f32.mrf.mxu0
      %v869 = vadd.f32 0.0, %v868
      %870 = vmatmul.f32.gmra.mxu0 %v547
      %v871 = vpop.f32.mrf.mxu0
      %v872 = vadd.f32 0.0, %v871
      %873 = vmatmul.f32.gmra.mxu0 %v549
      %v874 = vpop.f32.mrf.mxu0
      %v875 = vadd.f32 0.0, %v874
      %876 = vmatmul.f32.gmra.mxu0 %v551
      %v877 = vpop.f32.mrf.mxu0
      %v878 = vadd.f32 0.0, %v877
      %879 = vmatmul.f32.gmra.mxu0 %v553
      %v880 = vpop.f32.mrf.mxu0
      %v881 = vadd.f32 0.0, %v880
      %882 = vmatmul.f32.gmra.mxu0 %v555
      %v883 = vpop.f32.mrf.mxu0
      %v884 = vadd.f32 0.0, %v883
      %885 = vmatmul.f32.gmra.mxu0 %v557
      %v886 = vpop.f32.mrf.mxu0
      %v887 = vadd.f32 0.0, %v886
      %888 = vmatmul.f32.gmra.mxu0 %v559
      %v889 = vpop.f32.mrf.mxu0
      %v890 = vadd.f32 0.0, %v889
      %891 = vmatmul.f32.gmra.mxu0 %v561
      %v892 = vpop.f32.mrf.mxu0
      %v893 = vadd.f32 0.0, %v892
      %894 = vmatmul.f32.gmra.mxu0 %v563
      %v895 = vpop.f32.mrf.mxu0
      %v896 = vadd.f32 0.0, %v895
      %897 = vmatmul.f32.gmra.mxu0 %v835
      %v898 = vpop.f32.mrf.mxu0
      %v899 = vadd.f32 0.0, %v898
      %900 = vmatmul.f32.gmra.mxu0 %v837
      %v901 = vpop.f32.mrf.mxu0
      %v902 = vadd.f32 0.0, %v901
      %903 = vdwg.mxu0
      %v904 = vadd.f32 %v812, %v857
      %v905 = vadd.f32 %v813, %v860
      %v906 = vadd.f32 %v814, %v863
      %v907 = vadd.f32 %v815, %v866
      %v908 = vadd.f32 %v816, %v869
      %v909 = vadd.f32 %v817, %v872
      %v910 = vadd.f32 %v818, %v875
      %v911 = vadd.f32 %v819, %v878
      %v912 = vadd.f32 %v820, %v881
      %v913 = vadd.f32 %v821, %v884
      %v914 = vadd.f32 %v822, %v887
      %v915 = vadd.f32 %v823, %v890
      %v916 = vadd.f32 %v824, %v893
      %v917 = vadd.f32 %v825, %v896
      %v918 = vadd.f32 %v826, %v899
      %v919 = vadd.f32 %v827, %v902
      %s920 = scalar_lea.vmem %s1, 48
      %v921 = vld [vmem:[%s920] sm:$0xff]
      %v923 = vsel %vm295, %v224, 0
      %v926 = vsel %vm295, %v225, 0
      %928 = vmatpush.msra.mxu0 0.0
      %929 = vmatpush.msra.mxu0 0.0
      %930 = vmatpush.msra.mxu0 0.0
      %931 = vmatpush.msra.mxu0 0.0
      %932 = vmatpush.msra.mxu0 0.0
      %933 = vmatpush.msra.mxu0 0.0
      %934 = vmatpush.msra.mxu0 0.0
      %935 = vmatpush.msra.mxu0 0.0
      %936 = vmatpush.msra.mxu0 0.0
      %937 = vmatpush.msra.mxu0 0.0
      %938 = vmatpush.msra.mxu0 0.0
      %939 = vmatpush.msra.mxu0 0.0
      %940 = vmatpush.msra.mxu0 0.0
      %941 = vmatpush.msra.mxu0 0.0
      %942 = vmatpush.msra.mxu0 0.0
      %943 = vmatpush.msra.mxu0 %v921
      %944 = vmatmul.f32.gmra.mxu0 %v401
      %v945 = vpop.f32.mrf.mxu0
      %v946 = vadd.f32 0.0, %v945
      %947 = vmatmul.f32.gmra.mxu0 %v403
      %v948 = vpop.f32.mrf.mxu0
      %v949 = vadd.f32 0.0, %v948
      %950 = vmatmul.f32.gmra.mxu0 %v405
      %v951 = vpop.f32.mrf.mxu0
      %v952 = vadd.f32 0.0, %v951
      %953 = vmatmul.f32.gmra.mxu0 %v407
      %v954 = vpop.f32.mrf.mxu0
      %v955 = vadd.f32 0.0, %v954
      %956 = vmatmul.f32.gmra.mxu0 %v409
      %v957 = vpop.f32.mrf.mxu0
      %v958 = vadd.f32 0.0, %v957
      %959 = vmatmul.f32.gmra.mxu0 %v411
      %v960 = vpop.f32.mrf.mxu0
      %v961 = vadd.f32 0.0, %v960
      %962 = vmatmul.f32.gmra.mxu0 %v413
      %v963 = vpop.f32.mrf.mxu0
      %v964 = vadd.f32 0.0, %v963
      %965 = vmatmul.f32.gmra.mxu0 %v415
      %v966 = vpop.f32.mrf.mxu0
      %v967 = vadd.f32 0.0, %v966
      %968 = vmatmul.f32.gmra.mxu0 %v417
      %v969 = vpop.f32.mrf.mxu0
      %v970 = vadd.f32 0.0, %v969
      %971 = vmatmul.f32.gmra.mxu0 %v419
      %v972 = vpop.f32.mrf.mxu0
      %v973 = vadd.f32 0.0, %v972
      %974 = vmatmul.f32.gmra.mxu0 %v421
      %v975 = vpop.f32.mrf.mxu0
      %v976 = vadd.f32 0.0, %v975
      %977 = vmatmul.f32.gmra.mxu0 %v423
      %v978 = vpop.f32.mrf.mxu0
      %v979 = vadd.f32 0.0, %v978
      %980 = vmatmul.f32.gmra.mxu0 %v649
      %v981 = vpop.f32.mrf.mxu0
      %v982 = vadd.f32 0.0, %v981
      %983 = vmatmul.f32.gmra.mxu0 %v652
      %v984 = vpop.f32.mrf.mxu0
      %v985 = vadd.f32 0.0, %v984
      %986 = vmatmul.f32.gmra.mxu0 %v923
      %v987 = vpop.f32.mrf.mxu0
      %v988 = vadd.f32 0.0, %v987
      %989 = vmatmul.f32.gmra.mxu0 %v926
      %v990 = vpop.f32.mrf.mxu0
      %v991 = vadd.f32 0.0, %v990
      %992 = vdwg.mxu0
      %v993 = vadd.f32 %v904, %v946
      %v994 = vadd.f32 %v905, %v949
      %v995 = vadd.f32 %v906, %v952
      %v996 = vadd.f32 %v907, %v955
      %v997 = vadd.f32 %v908, %v958
      %v998 = vadd.f32 %v909, %v961
      %v999 = vadd.f32 %v910, %v964
      %v1000 = vadd.f32 %v911, %v967
      %v1001 = vadd.f32 %v912, %v970
      %v1002 = vadd.f32 %v913, %v973
      %v1003 = vadd.f32 %v914, %v976
      %v1004 = vadd.f32 %v915, %v979
      %v1005 = vadd.f32 %v916, %v982
      %v1006 = vadd.f32 %v917, %v985
      %v1007 = vadd.f32 %v918, %v988
      %v1008 = vadd.f32 %v919, %v991
      %v1010 = vrot.slane %v224, 1
      %v1011 = vrot.slane %v225, 1
      %v1012 = vsel %vm252, %v1010, %v1011
      %v1013 = vrot.slane %v226, 1
      %v1014 = vsel %vm252, %v1011, %v1013
      %s1015 = scalar_lea.vmem %s1, 56
      %v1016 = vld [vmem:[%s1015] sm:$0xff]
      %v1017 = vsel %vm295, %v1012, 0
      %v1019 = vsel %vm295, %v1014, 0
      %1021 = vmatpush.msra.mxu0 0.0
      %1022 = vmatpush.msra.mxu0 0.0
      %1023 = vmatpush.msra.mxu0 0.0
      %1024 = vmatpush.msra.mxu0 0.0
      %1025 = vmatpush.msra.mxu0 0.0
      %1026 = vmatpush.msra.mxu0 0.0
      %1027 = vmatpush.msra.mxu0 0.0
      %1028 = vmatpush.msra.mxu0 0.0
      %1029 = vmatpush.msra.mxu0 0.0
      %1030 = vmatpush.msra.mxu0 0.0
      %1031 = vmatpush.msra.mxu0 0.0
      %1032 = vmatpush.msra.mxu0 0.0
      %1033 = vmatpush.msra.mxu0 0.0
      %1034 = vmatpush.msra.mxu0 0.0
      %1035 = vmatpush.msra.mxu0 0.0
      %1036 = vmatpush.msra.mxu0 %v1016
      %1037 = vmatmul.f32.gmra.mxu0 %v304
      %v1038 = vpop.f32.mrf.mxu0
      %v1039 = vadd.f32 0.0, %v1038
      %1040 = vmatmul.f32.gmra.mxu0 %v306
      %v1041 = vpop.f32.mrf.mxu0
      %v1042 = vadd.f32 0.0, %v1041
      %1043 = vmatmul.f32.gmra.mxu0 %v308
      %v1044 = vpop.f32.mrf.mxu0
      %v1045 = vadd.f32 0.0, %v1044
      %1046 = vmatmul.f32.gmra.mxu0 %v310
      %v1047 = vpop.f32.mrf.mxu0
      %v1048 = vadd.f32 0.0, %v1047
      %1049 = vmatmul.f32.gmra.mxu0 %v312
      %v1050 = vpop.f32.mrf.mxu0
      %v1051 = vadd.f32 0.0, %v1050
      %1052 = vmatmul.f32.gmra.mxu0 %v314
      %v1053 = vpop.f32.mrf.mxu0
      %v1054 = vadd.f32 0.0, %v1053
      %1055 = vmatmul.f32.gmra.mxu0 %v316
      %v1056 = vpop.f32.mrf.mxu0
      %v1057 = vadd.f32 0.0, %v1056
      %1058 = vmatmul.f32.gmra.mxu0 %v318
      %v1059 = vpop.f32.mrf.mxu0
      %v1060 = vadd.f32 0.0, %v1059
      %1061 = vmatmul.f32.gmra.mxu0 %v320
      %v1062 = vpop.f32.mrf.mxu0
      %v1063 = vadd.f32 0.0, %v1062
      %1064 = vmatmul.f32.gmra.mxu0 %v322
      %v1065 = vpop.f32.mrf.mxu0
      %v1066 = vadd.f32 0.0, %v1065
      %1067 = vmatmul.f32.gmra.mxu0 %v324
      %v1068 = vpop.f32.mrf.mxu0
      %v1069 = vadd.f32 0.0, %v1068
      %1070 = vmatmul.f32.gmra.mxu0 %v326
      %v1071 = vpop.f32.mrf.mxu0
      %v1072 = vadd.f32 0.0, %v1071
      %1073 = vmatmul.f32.gmra.mxu0 %v743
      %v1074 = vpop.f32.mrf.mxu0
      %v1075 = vadd.f32 0.0, %v1074
      %1076 = vmatmul.f32.gmra.mxu0 %v745
      %v1077 = vpop.f32.mrf.mxu0
      %v1078 = vadd.f32 0.0, %v1077
      %1079 = vmatmul.f32.gmra.mxu0 %v1017
      %v1080 = vpop.f32.mrf.mxu0
      %v1081 = vadd.f32 0.0, %v1080
      %1082 = vmatmul.f32.gmra.mxu0 %v1019
      %v1083 = vpop.f32.mrf.mxu0
      %v1084 = vadd.f32 0.0, %v1083
      %1085 = vdwg.mxu0
      %v1086 = vadd.f32 %v993, %v1039
      %v1087 = vadd.f32 %v994, %v1042
      %v1088 = vadd.f32 %v995, %v1045
      %v1089 = vadd.f32 %v996, %v1048
      %v1090 = vadd.f32 %v997, %v1051
      %v1091 = vadd.f32 %v998, %v1054
      %v1092 = vadd.f32 %v999, %v1057
      %v1093 = vadd.f32 %v1000, %v1060
      %v1094 = vadd.f32 %v1001, %v1063
      %v1095 = vadd.f32 %v1002, %v1066
      %v1096 = vadd.f32 %v1003, %v1069
      %v1097 = vadd.f32 %v1004, %v1072
      %v1098 = vadd.f32 %v1005, %v1075
      %v1099 = vadd.f32 %v1006, %v1078
      %v1100 = vadd.f32 %v1007, %v1081
      %v1101 = vadd.f32 %v1008, %v1084
      %v1102 = vrot.slane %v224, 2
      %v1103 = vrot.slane %v225, 2
      %v1104 = vsel %vm490, %v1102, %v1103
      %v1105 = vrot.slane %v226, 2
      %v1106 = vsel %vm490, %v1103, %v1105
      %s1107 = scalar_lea.vmem %s1, 64
      %v1108 = vld [vmem:[%s1107] sm:$0xff]
      %v1109 = vsel %vm295, %v1104, 0
      %v1111 = vsel %vm295, %v1106, 0
      %1113 = vmatpush.msra.mxu0 0.0
      %1114 = vmatpush.msra.mxu0 0.0
      %1115 = vmatpush.msra.mxu0 0.0
      %1116 = vmatpush.msra.mxu0 0.0
      %1117 = vmatpush.msra.mxu0 0.0
      %1118 = vmatpush.msra.mxu0 0.0
      %1119 = vmatpush.msra.mxu0 0.0
      %1120 = vmatpush.msra.mxu0 0.0
      %1121 = vmatpush.msra.mxu0 0.0
      %1122 = vmatpush.msra.mxu0 0.0
      %1123 = vmatpush.msra.mxu0 0.0
      %1124 = vmatpush.msra.mxu0 0.0
      %1125 = vmatpush.msra.mxu0 0.0
      %1126 = vmatpush.msra.mxu0 0.0
      %1127 = vmatpush.msra.mxu0 0.0
      %1128 = vmatpush.msra.mxu0 %v1108
      %1129 = vmatmul.f32.gmra.mxu0 %v541
      %v1130 = vpop.f32.mrf.mxu0
      %v1131 = vadd.f32 0.0, %v1130
      %1132 = vmatmul.f32.gmra.mxu0 %v543
      %v1133 = vpop.f32.mrf.mxu0
      %v1134 = vadd.f32 0.0, %v1133
      %1135 = vmatmul.f32.gmra.mxu0 %v545
      %v1136 = vpop.f32.mrf.mxu0
      %v1137 = vadd.f32 0.0, %v1136
      %1138 = vmatmul.f32.gmra.mxu0 %v547
      %v1139 = vpop.f32.mrf.mxu0
      %v1140 = vadd.f32 0.0, %v1139
      %1141 = vmatmul.f32.gmra.mxu0 %v549
      %v1142 = vpop.f32.mrf.mxu0
      %v1143 = vadd.f32 0.0, %v1142
      %1144 = vmatmul.f32.gmra.mxu0 %v551
      %v1145 = vpop.f32.mrf.mxu0
      %v1146 = vadd.f32 0.0, %v1145
      %1147 = vmatmul.f32.gmra.mxu0 %v553
      %v1148 = vpop.f32.mrf.mxu0
      %v1149 = vadd.f32 0.0, %v1148
      %1150 = vmatmul.f32.gmra.mxu0 %v555
      %v1151 = vpop.f32.mrf.mxu0
      %v1152 = vadd.f32 0.0, %v1151
      %1153 = vmatmul.f32.gmra.mxu0 %v557
      %v1154 = vpop.f32.mrf.mxu0
      %v1155 = vadd.f32 0.0, %v1154
      %1156 = vmatmul.f32.gmra.mxu0 %v559
      %v1157 = vpop.f32.mrf.mxu0
      %v1158 = vadd.f32 0.0, %v1157
      %1159 = vmatmul.f32.gmra.mxu0 %v561
      %v1160 = vpop.f32.mrf.mxu0
      %v1161 = vadd.f32 0.0, %v1160
      %1162 = vmatmul.f32.gmra.mxu0 %v563
      %v1163 = vpop.f32.mrf.mxu0
      %v1164 = vadd.f32 0.0, %v1163
      %1165 = vmatmul.f32.gmra.mxu0 %v835
      %v1166 = vpop.f32.mrf.mxu0
      %v1167 = vadd.f32 0.0, %v1166
      %1168 = vmatmul.f32.gmra.mxu0 %v837
      %v1169 = vpop.f32.mrf.mxu0
      %v1170 = vadd.f32 0.0, %v1169
      %1171 = vmatmul.f32.gmra.mxu0 %v1109
      %v1172 = vpop.f32.mrf.mxu0
      %v1173 = vadd.f32 0.0, %v1172
      %1174 = vmatmul.f32.gmra.mxu0 %v1111
      %v1175 = vpop.f32.mrf.mxu0
      %v1176 = vadd.f32 0.0, %v1175
      %1177 = vdwg.mxu0
      %v1178 = vadd.f32 %v1086, %v1131
      %v1179 = vadd.f32 %v1087, %v1134
      %v1180 = vadd.f32 %v1088, %v1137
      %v1181 = vadd.f32 %v1089, %v1140
      %v1182 = vadd.f32 %v1090, %v1143
      %v1183 = vadd.f32 %v1091, %v1146
      %v1184 = vadd.f32 %v1092, %v1149
      %v1185 = vadd.f32 %v1093, %v1152
      %v1186 = vadd.f32 %v1094, %v1155
      %v1187 = vadd.f32 %v1095, %v1158
      %v1188 = vadd.f32 %v1096, %v1161
      %v1189 = vadd.f32 %v1097, %v1164
      %v1190 = vadd.f32 %v1098, %v1167
      %v1191 = vadd.f32 %v1099, %v1170
      %v1192 = vadd.f32 %v1100, %v1173
      %v1193 = vadd.f32 %v1101, %v1176
      %v1194 = vld [vmem:[%s2] sm:$0x1]
      %v1196 = vperm.slane %v1194, 0
      %v1198 = vadd.f32 %v1178, %v1196
      %v1199 = vadd.f32 %v1179, %v1196
      %v1200 = vadd.f32 %v1180, %v1196
      %v1201 = vadd.f32 %v1181, %v1196
      %v1202 = vadd.f32 %v1182, %v1196
      %v1203 = vadd.f32 %v1183, %v1196
      %v1204 = vadd.f32 %v1184, %v1196
      %v1205 = vadd.f32 %v1185, %v1196
      %v1206 = vadd.f32 %v1186, %v1196
      %v1207 = vadd.f32 %v1187, %v1196
      %v1208 = vadd.f32 %v1188, %v1196
      %v1209 = vadd.f32 %v1189, %v1196
      %v1210 = vadd.f32 %v1190, %v1196
      %v1211 = vadd.f32 %v1191, %v1196
      %v1212 = vadd.f32 %v1192, %v1196
      %v1213 = vadd.f32 %v1193, %v1196
      %vm1214 = vcmp.gt.f32.partialorder %v1198, 0.0
      %vm1215 = vcmp.gt.f32.partialorder %v1199, 0.0
      %vm1216 = vcmp.gt.f32.partialorder %v1200, 0.0
      %vm1217 = vcmp.gt.f32.partialorder %v1201, 0.0
      %vm1218 = vcmp.gt.f32.partialorder %v1202, 0.0
      %vm1219 = vcmp.gt.f32.partialorder %v1203, 0.0
      %vm1220 = vcmp.gt.f32.partialorder %v1204, 0.0
      %vm1221 = vcmp.gt.f32.partialorder %v1205, 0.0
      %vm1222 = vcmp.gt.f32.partialorder %v1206, 0.0
      %vm1223 = vcmp.gt.f32.partialorder %v1207, 0.0
      %vm1224 = vcmp.gt.f32.partialorder %v1208, 0.0
      %vm1225 = vcmp.gt.f32.partialorder %v1209, 0.0
      %vm1226 = vcmp.gt.f32.partialorder %v1210, 0.0
      %vm1227 = vcmp.gt.f32.partialorder %v1211, 0.0
      %vm1228 = vcmp.gt.f32.partialorder %v1212, 0.0
      %vm1229 = vcmp.gt.f32.partialorder %v1213, 0.0
      %v1230 = vmul.f32 %v1198, 0.01
      %v1231 = vmul.f32 %v1199, 0.01
      %v1232 = vmul.f32 %v1200, 0.01
      %v1233 = vmul.f32 %v1201, 0.01
      %v1234 = vmul.f32 %v1202, 0.01
      %v1235 = vmul.f32 %v1203, 0.01
      %v1236 = vmul.f32 %v1204, 0.01
      %v1237 = vmul.f32 %v1205, 0.01
      %v1238 = vmul.f32 %v1206, 0.01
      %v1239 = vmul.f32 %v1207, 0.01
      %v1240 = vmul.f32 %v1208, 0.01
      %v1241 = vmul.f32 %v1209, 0.01
      %v1242 = vmul.f32 %v1210, 0.01
      %v1243 = vmul.f32 %v1211, 0.01
      %v1244 = vmul.f32 %v1212, 0.01
      %v1245 = vmul.f32 %v1213, 0.01
      %v1246 = vsel %vm1214, %v1198, %v1230
      %v1247 = vsel %vm1215, %v1199, %v1231
      %v1248 = vsel %vm1216, %v1200, %v1232
      %v1249 = vsel %vm1217, %v1201, %v1233
      %v1250 = vsel %vm1218, %v1202, %v1234
      %v1251 = vsel %vm1219, %v1203, %v1235
      %v1252 = vsel %vm1220, %v1204, %v1236
      %v1253 = vsel %vm1221, %v1205, %v1237
      %v1254 = vsel %vm1222, %v1206, %v1238
      %v1255 = vsel %vm1223, %v1207, %v1239
      %v1256 = vsel %vm1224, %v1208, %v1240
      %v1257 = vsel %vm1225, %v1209, %v1241
      %v1258 = vsel %vm1226, %v1210, %v1242
      %v1259 = vsel %vm1227, %v1211, %v1243
      %v1260 = vsel %vm1228, %v1212, %v1244
      %v1261 = vsel %vm1229, %v1213, %v1245
      %1262 = vst.msk [vmem:[%s192] sm:$0xff] %vm295, %v1246
      %1263 = vst.msk [vmem:[%s192 + $0x8] sm:$0xff] %vm295, %v1247
      %1264 = vst.msk [vmem:[%s192 + $0x10] sm:$0xff] %vm295, %v1248
      %1265 = vst.msk [vmem:[%s192 + $0x18] sm:$0xff] %vm295, %v1249
      %1266 = vst.msk [vmem:[%s192 + $0x20] sm:$0xff] %vm295, %v1250
      %1267 = vst.msk [vmem:[%s192 + $0x28] sm:$0xff] %vm295, %v1251
      %1268 = vst.msk [vmem:[%s192 + $0x30] sm:$0xff] %vm295, %v1252
      %1269 = vst.msk [vmem:[%s192 + $0x38] sm:$0xff] %vm295, %v1253
      %1270 = vst.msk [vmem:[%s192 + $0x40] sm:$0xff] %vm295, %v1254
      %1271 = vst.msk [vmem:[%s192 + $0x48] sm:$0xff] %vm295, %v1255
      %1272 = vst.msk [vmem:[%s192 + $0x50] sm:$0xff] %vm295, %v1256
      %1273 = vst.msk [vmem:[%s192 + $0x58] sm:$0xff] %vm295, %v1257
      %1274 = vst.msk [vmem:[%s192 + $0x60] sm:$0xff] %vm295, %v1258
      %1275 = vst.msk [vmem:[%s192 + $0x68] sm:$0xff] %vm295, %v1259
      %1276 = vst.msk [vmem:[%s192 + $0x70] sm:$0xff] %vm295, %v1260
      %1277 = vst.msk [vmem:[%s192 + $0x78] sm:$0xff] %vm295, %v1261
      %s1278 = smul.u32 16, %s19
      %p1279 = scmp.lt.s32.totalorder %s18, 1
      %s1280 = scalar_select %p1279, %s18, 1
      %p1281 = scmp.lt.s32.totalorder %s1278, 31
      %s1282 = scalar_select %p1281, %s1278, 31
      %s1283 = smul.addr %s1280, 32
      %s1284 = sadd.s32 %s1282, %s1283
      %s1285 = smul.addr %s1284, 8
      %s1286 = scalar_lea.vmem %s3, %s1285
      // Predicated region
      $region33: #{conv_block_forward.3} parent=31 // pred_check
        %p1287 = pneg %p114
      $region34: #{conv_block_forward.3} parent=31 // pred_check_branch
        %1289 = sbr.rel (%p1287) target = $region36
      $region35: #{conv_block_forward.3} parent=31 // pred_region
        %s1290 = smul.u32 16, %s19
      $region36: #{conv_block_forward.3} parent=31 // pred_fallthru
        _
    $region32: #{conv_block_forward.3} parent=5 // pred_fallthru
      _
    %p1291 = scmp.le.s32.totalorder 2, %s9
    // Predicated region
    $region37: #{conv_block_forward.3} parent=5 // pred_check
      %p1292 = pneg %p1291
    $region38: #{conv_block_forward.3} parent=5 // pred_check_branch
      %1294 = sbr.rel (%p1292) target = $region40
    $region39: #{conv_block_forward.3} parent=5 // pred_region
      %s1295 = ssub.s32 %s9, 2
      // Predicated region
      $region41: #{conv_block_forward.3} parent=39 // pred_check
        %p1296 = pneg %p120
      $region42: #{conv_block_forward.3} parent=39 // pred_check_branch
        %1298 = sbr.rel (%p1296) target = $region44
      $region43: #{conv_block_forward.3} parent=39 // pred_region
        %s1299 = smul.u32 16, %s21
        %p1300 = scmp.lt.s32.totalorder %s20, 1
        %s1301 = scalar_select %p1300, %s20, 1
        %p1302 = scmp.lt.s32.totalorder %s1299, 31
        %s1303 = scalar_select %p1302, %s1299, 31
        %s1304 = smul.addr %s1301, 32
        %s1305 = sadd.s32 %s1303, %s1304
        %s1306 = smul.addr %s1305, 8
        %s1307 = scalar_lea.vmem %s3, %s1306
      $region44: #{conv_block_forward.3} parent=39 // pred_fallthru
        _
    $region40: #{conv_block_forward.3} parent=5 // pred_fallthru
      _
  $region6: #{conv_block_forward.3} parent=0 // loop_footer
    %s13 = sadd.s32 1, %s9
  $region7: #{conv_block_forward.3} parent=0 // loop_footer_branch
    %8 = sbr.rel target = $region3
  $region8: #{conv_block_forward.3} parent=0 // loop_exit
    _

// kernel: conv_block_forward.2
$region0: #{conv_block_forward.2}
  #allocation0 [shape = 'u32[]', space=smem, size = 0x4, offset = 0x4, fixed_abs, tag = 'smem constant byte address 0x4 - core index']
  #allocation1 [shape = 'u32[72,128]{1,0:T(1,128)}', space=vmem, size = 0x9000, scoped, tag = 'internal scratch']
  %s0 = inlined_call_operand.vmem [shape: f32[2,18,18,4], index: 0, kind: input, shape index: {}]
  %s1 = inlined_call_operand.vmem [shape: f32[9,4,8], index: 1, kind: input, shape index: {}]
  %s2 = inlined_call_operand.vmem [shape: f32[1,8], index: 2, kind: input, shape index: {}]
  %s3 = inlined_call_operand.vmem [shape: f32[2,256,8], index: 3, kind: output, shape index: {}]
  %s4 = sld [smem:[#allocation0]]
  $region45: #{conv_block_forward.2} parent=0
    _
  %s6 = ssub.s32 1, %s4
  %s7 = scalar_select 0, %s6, %s4
  loop: start=0, step=1, limit=6
  $region2: #{conv_block_forward.2} parent=0 // loop_pre_header
    _
  $region3: #{conv_block_forward.2} parent=0 // loop_header
    %s9 = sphi 0, %s13
    %p10 = scmp.ge.s32.totalorder %s9, 6
    %s16 = sphi 0, %s28
    %s17 = sphi 0, %s24
    %s18 = sphi 0, %s16
    %s19 = sphi 0, %s17
    %s20 = sphi 0, %s18
    %s21 = sphi 0, %s19
    %s31 = sphi 0, %s33
    %s34 = sphi 0, %s31
    %s35 = sphi 0, %s34
    %s51 = sphi 0, %s35
    %s55 = sphi 0, %s55
    %s57 = sphi 0, %s55
    %s58 = sphi 0, %s57
    %s72 = sphi 0, %s58
    %s76 = sphi 0, %s76
    %s78 = sphi 0, %s76
    %s79 = sphi 0, %s78
    %s93 = sphi 0, %s79
    %s101 = sphi 0, %s103
    %s104 = sphi 0, %s101
    %s105 = sphi 0, %s104
    %s121 = sphi 0, %s105
  $region4: #{conv_block_forward.2} parent=0 // loop_header_branch
    %12 = sbr.rel (%p10) target = $region8
  $region5: #{conv_block_forward.2} parent=0 // loop_body
    %s14 = ssub.s32 %s9, 1
    %s15 = ssub.s32 %s9, 2
    %s22 = sadd.s32 1, %s17
    %p23 = scmp.ge.s32.totalorder %s22, 2
    %s24 = scalar_select %p23, 0, %s22
    %s25 = sadd.s32 1, %s16
    %s26 = scalar_select %p23, %s25, %s16
    %p27 = scmp.ge.s32.totalorder %s26, 2
    %s28 = scalar_select %p27, 0, %s26
    %s29 = ssub.s32 %s16, %s28
    %p30 = scmp.eq.s32.totalorder %s29, 0
    %s32 = sadd.s32 %s31, 1
    %s33 = scalar_select %p30, %s31, %s32
    %p36 = pneg %p30
    %p37 = scmp.eq.s32.totalorder %s9, 3
    %p38 = por %p36, %p37
    %p39 = scmp.ne.s32.totalorder %s31, %s34
    %p40 = scmp.eq.s32.totalorder %s9, 0
    %p41 = por %p39, %p40
    %p42 = scmp.ne.s32.totalorder %s31, %s34
    %p43 = scmp.eq.s32.totalorder %s14, 3
    %p44 = por %p42, %p43
    %p45 = scmp.ne.s32.totalorder %s34, %s35
    %p46 = scmp.eq.s32.totalorder %s14, 0
    %p47 = por %p45, %p46
    %p48 = scmp.ne.s32.totalorder %s34, %s35
    %p49 = scmp.eq.s32.totalorder %s15, 3
    %p50 = por %p48, %p49
    %p52 = scmp.ne.s32.totalorder %s35, %s51
    %p53 = scmp.eq.s32.totalorder %s15, 0
    %p54 = por %p52, %p53
    %s56 = sadd.s32 %s55, 1
    %p59 = scmp.eq.s32.totalorder %s9, 3
    %p60 = scmp.ne.s32.totalorder %s55, %s57
    %p61 = scmp.eq.s32.totalorder %s9, 0
    %p62 = por %p60, %p61
    %p63 = scmp.ne.s32.totalorder %s55, %s57
    %p64 = scmp.eq.s32.totalorder %s14, 3
    %p65 = por %p63, %p64
    %p66 = scmp.ne.s32.totalorder %s57, %s58
    %p67 = scmp.eq.s32.totalorder %s14, 0
    %p68 = por %p66, %p67
    %p69 = scmp.ne.s32.totalorder %s57, %s58
    %p70 = scmp.eq.s32.totalorder %s15, 3
    %p71 = por %p69, %p70
    %p73 = scmp.ne.s32.totalorder %s58, %s72
    %p74 = scmp.eq.s32.totalorder %s15, 0
    %p75 = por %p73, %p74
    %s77 = sadd.s32 %s76, 1
    %p80 = scmp.eq.s32.totalorder %s9, 3
    %p81 = scmp.ne.s32.totalorder %s76, %s78
    %p82 = scmp.eq.s32.totalorder %s9, 0
    %p83 = por %p81, %p82
    %p84 = scmp.ne.s32.totalorder %s76, %s78
    %p85 = scmp.eq.s32.totalorder %s14, 3
    %p86 = por %p84, %p85
    %p87 = scmp.ne.s32.totalorder %s78, %s79
    %p88 = scmp.eq.s32.totalorder %s14, 0
    %p89 = por %p87, %p88
    %p90 = scmp.ne.s32.totalorder %s78, %s79
    %p91 = scmp.eq.s32.totalorder %s15, 3
    %p92 = por %p90, %p91
    %p94 = scmp.ne.s32.totalorder %s79, %s93
    %p95 = scmp.eq.s32.totalorder %s15, 0
    %p96 = por %p94, %p95
    %s97 = ssub.s32 %s16, %s28
    %s98 = ssub.s32 %s17, %s24
    %s99 = sor.u32 %s97, %s98
    %p100 = scmp.eq.s32.totalorder %s99, 0
    %s102 = sadd.s32 %s101, 1
    %s103 = scalar_select %p100, %s101, %s102
    %p106 = pneg %p100
    %p107 = scmp.eq.s32.totalorder %s9, 3
    %p108 = por %p106, %p107
    %p109 = scmp.ne.s32.totalorder %s101, %s104
    %p110 = scmp.eq.s32.totalorder %s9, 0
    %p111 = por %p109, %p110
    %p112 = scmp.ne.s32.totalorder %s101, %s104
    %p113 = scmp.eq.s32.totalorder %s14, 3
    %p114 = por %p112, %p113
    %p115 = scmp.ne.s32.totalorder %s104, %s105
    %p116 = scmp.eq.s32.totalorder %s14, 0
    %p117 = por %p115, %p116
    %p118 = scmp.ne.s32.totalorder %s104, %s105
    %p119 = scmp.eq.s32.totalorder %s15, 3
    %p120 = por %p118, %p119
    %p122 = scmp.ne.s32.totalorder %s105, %s121
    %p123 = scmp.eq.s32.totalorder %s15, 0
    %p124 = por %p122, %p123
    %p125 = scmp.le.s32.totalorder 1, %s9
    %p126 = scmp.lt.s32.totalorder %s9, 5
    %p127 = pnand %p125, %p126
    %p128 = pneg %p127
    // Predicated region
    $region9: #{conv_block_forward.2} parent=5 // pred_check
      _
    $region10: #{conv_block_forward.2} parent=5 // pred_check_branch
      %130 = sbr.rel (%p127) target = $region12
    $region11: #{conv_block_forward.2} parent=5 // pred_region
      %s131 = ssub.s32 %s9, 1
      // Predicated region
      $region13: #{conv_block_forward.2} parent=11 // pred_check
        %p132 = pneg %p68
      $region14: #{conv_block_forward.2} parent=11 // pred_check_branch
        %134 = sbr.rel (%p132) target = $region16
      $region15: #{conv_block_forward.2} parent=11 // pred_region
        _
      $region16: #{conv_block_forward.2} parent=11 // pred_fallthru
        _
      // Predicated region
      $region17: #{conv_block_forward.2} parent=11 // pred_check
        %p135 = pneg %p89
      $region18: #{conv_block_forward.2} parent=11 // pred_check_branch
        %137 = sbr.rel (%p135) target = $region20
      $region19: #{conv_block_forward.2} parent=11 // pred_region
        _
      $region20: #{conv_block_forward.2} parent=11 // pred_fallthru
        _
    $region12: #{conv_block_forward.2} parent=5 // pred_fallthru
      _
    %p138 = scmp.lt.s32.totalorder %s9, 4
    // Predicated region
    $region21: #{conv_block_forward.2} parent=5 // pred_check
      %p139 = pneg %p138
    $region22: #{conv_block_forward.2} parent=5 // pred_check_branch
      %141 = sbr.rel (%p139) target = $region24
    $region23: #{conv_block_forward.2} parent=5 // pred_region
      // Predicated region
      $region25: #{conv_block_forward.2} parent=23 // pred_check
        %p142 = pneg %p41
      $region26: #{conv_block_forward.2} parent=23 // pred_check_branch
        %144 = sbr.rel (%p142) target = $region28
      $region27: #{conv_block_forward.2} parent=23 // pred_region
        %p145 = scmp.lt.s32.totalorder %s16, 1
        %s146 = scalar_select %p145, %s16, 1
        %s147 = smul.addr %s146, 54
        %s148 = smul.addr %s147, 8
        %s149 = scalar_lea.vmem %s0, %s148
      $region28: #{conv_block_forward.2} parent=23 // pred_fallthru
        _
    $region24: #{conv_block_forward.2} parent=5 // pred_fallthru
      _
    %p150 = scmp.le.s32.totalorder 1, %s9
    %p151 = scmp.lt.s32.totalorder %s9, 5
    %p152 = pnand %p150, %p151
    %p153 = pneg %p152
    // Predicated region
    $region29: #{conv_block_forward.2} parent=5 // pred_check
      _
    $region30: #{conv_block_forward.2} parent=5 // pred_check_branch
      %155 = sbr.rel (%p152) target = $region32
    $region31: #{conv_block_forward.2} parent=5 // pred_region
      %s156 = ssub.s32 %s9, 1
      %p157 = scmp.lt.s32.totalorder %s18, 1
      %s158 = scalar_select %p157, %s18, 1
      %s159 = smul.addr %s158, 54
      %s160 = smul.addr %s159, 8
      %s161 = scalar_lea.vmem %s0, %s160
      %p162 = pneg %p47
      %p163 = pneg %p44
      %p164 = pneg %p68
      %p165 = pneg %p65
      %p166 = pneg %p89
      %p167 = pneg %p86
      %p168 = pneg %p117
      %p169 = pneg %p114
      %s170 = smul.u32 16, %s19
      %p171 = scmp.lt.s32.totalorder %s18, 1
      %s172 = scalar_select %p171, %s18, 1
      %p173 = scmp.lt.s32.totalorder %s170, 31
      %s174 = scalar_select %p173, %s170, 31
      %s175 = smul.addr %s172, 32
      %s176 = sadd.s32 %s174, %s175
      %s177 = smul.addr %s176, 8
      %s178 = scalar_lea.vmem %s3, %s177
      %p179 = scmp.lt.s32.totalorder %s18, 1
      %s180 = scalar_select %p179, %s18, 1
      %s181 = smul.addr %s180, 54
      %s182 = smul.addr %s181, 8
      %s183 = scalar_lea.vmem %s0, %s182
      %s184 = smul.u32 16, %s19
      %p185 = scmp.lt.s32.totalorder %s18, 1
      %s186 = scalar_select %p185, %s18, 1
      %p187 = scmp.lt.s32.totalorder %s184, 31
      %s188 = scalar_select %p187, %s184, 31
      %s189 = smul.addr %s186, 32
      %s190 = sadd.s32 %s188, %s189
      %s191 = smul.addr %s190, 8
      %s192 = scalar_lea.vmem %s3, %s191
      %s193 = smul.u32 16, %s19
      %s194 = smul.u32 %s19, 8
      %s195 = smul.u32 %s194, 24
      %s196 = scalar_lea.vmem %s183, %s195
      %v197 = vld [vmem:[%s196] sm:$0xff]
      %v198 = vld [vmem:[%s196 + $0x8] sm:$0xff]
      %v199 = vld [vmem:[%s196 + $0x10] sm:$0x3]
      %v200 = vld [vmem:[%s196 + $0x18] sm:$0xff]
      %v201 = vld [vmem:[%s196 + $0x20] sm:$0xff]
      %v202 = vld [vmem:[%s196 + $0x28] sm:$0x3]
      %v203 = vld [vmem:[%s196 + $0x30] sm:$0xff]
      %v204 = vld [vmem:[%s196 + $0x38] sm:$0xff]
      %v205 = vld [vmem:[%s196 + $0x40] sm:$0x3]
      %v206 = vld [vmem:[%s196 + $0x48] sm:$0xff]
      %v207 = vld [vmem:[%s196 + $0x50] sm:$0xff]
      %v208 = vld [vmem:[%s196 + $0x58] sm:$0x3]
      %v209 = vld [vmem:[%s196 + $0x60] sm:$0xff]
      %v210 = vld [vmem:[%s196 + $0x68] sm:$0xff]
      %v211 = vld [vmem:[%s196 + $0x70] sm:$0x3]
      %v212 = vld [vmem:[%s196 + $0x78] sm:$0xff]
      %v213 = vld [vmem:[%s196 + $0x80] sm:$0xff]
      %v214 = vld [vmem:[%s196 + $0x88] sm:$0x3]
      %v215 = vld [vmem:[%s196 + $0x90] sm:$0xff]
      %v216 = vld [vmem:[%s196 + $0x98] sm:$0xff]
      %v217 = vld [vmem:[%s196 + $0xa0] sm:$0x3]
      %v218 = vld [vmem:[%s196 + $0xa8] sm:$0xff]
      %v219 = vld [vmem:[%s196 + $0xb0] sm:$0xff]
      %v220 = vld [vmem:[%s196 + $0xb8] sm:$0x3]
      %v221 = vld [vmem:[%s196 + $0xc0] sm:$0xff]
      %v222 = vld [vmem:[%s196 + $0xc8] sm:$0xff]
      %v223 = vld [vmem:[%s196 + $0xd0] sm:$0x3]
      %v224 = vld [vmem:[%s196 + $0xd8] sm:$0xff]
      %v225 = vld [vmem:[%s196 + $0xe0] sm:$0xff]
      %v226 = vld [vmem:[%s196 + $0xe8] sm:$0x3]
      %v227 = vld [vmem:[%s1] sm:$0xf]
      %vm252 = vcmask 1046528
      %v253 = vrot.slane %v197, 1
      %v254 = vrot.slane %v198, 1
      %v255 = vsel %vm252, %v253, %v254
      %v256 = vrot.slane %v199, 1
      %v257 = vsel %vm252, %v254, %v256
      %v258 = vrot.slane %v200, 1
      %v259 = vrot.slane %v201, 1
      %v260 = vsel %vm252, %v258, %v259
      %v261 = vrot.slane %v202, 1
      %v262 = vsel %vm252, %v259, %v261
      %v263 = vrot.slane %v203, 1
      %v264 = vrot.slane %v204, 1
      %v265 = vsel %vm252, %v263, %v264
      %v266 = vrot.slane %v205, 1
      %v267 = vsel %vm252, %v264, %v266
      %v268 = vrot.slane %v206, 1
      %v269 = vrot.slane %v207, 1
      %v270 = vsel %vm252, %v268, %v269
      %v271 = vrot.slane %v208, 1
      %v272 = vsel %vm252, %v269, %v271
      %v273 = vrot.slane %v209, 1
      %v274 = vrot.slane %v210, 1
      %v275 = vsel %vm252, %v273, %v274
      %v276 = vrot.slane %v211, 1
      %v277 = vsel %vm252, %v274, %v276
      %v278 = vrot.slane %v212, 1
      %v279 = vrot.slane %v213, 1
      %v280 = vsel %vm252, %v278, %v279
      %v281 = vrot.slane %v214, 1
      %v282 = vsel %vm252, %v279, %v281
      %v283 = vrot.slane %v215, 1
      %v284 = vrot.slane %v216, 1
      %v285 = vsel %vm252, %v283, %v284
      %v286 = vrot.slane %v217, 1
      %v287 = vsel %vm252, %v284, %v286
      %v288 = vrot.slane %v218, 1
      %v289 = vrot.slane %v219, 1
      %v290 = vsel %vm252, %v288, %v289
      %v291 = vrot.slane %v220, 1
      %v292 = vsel %vm252, %v289, %v291
      %s293 = scalar_lea.vmem %s1, 4
      %v294 = vld [vmem:[%s293] sm:$0xf]
      %vm295 = vcmask 31744
      %v296 = vsel %vm295, %v255, 0
      %v298 = vsel %vm295, %v257, 0
      %v300 = vsel %vm295, %v260, 0
      %v302 = vsel %vm295, %v262, 0
      %v304 = vsel %vm295, %v265, 0
      %v306 = vsel %vm295, %v267, 0
      %v308 = vsel %vm295, %v270, 0
      %v310 = vsel %vm295, %v272, 0
      %v312 = vsel %vm295, %v275, 0
      %v314 = vsel %vm295, %v277, 0
      %v316 = vsel %vm295, %v280, 0
      %v318 = vsel %vm295, %v282, 0
      %v320 = vsel %vm295, %v285, 0
      %v322 = vsel %vm295, %v287, 0
      %v324 = vsel %vm295, %v290, 0
      %v326 = vsel %vm295, %v292, 0
      %vm328 = vcmask 1043456
      %v330 = vsel %vm328, %v294, 0
      %332 = vmatpush.msra.mxu0 0.0
      %333 = vmatpush.msra.mxu0 0.0
      %334 = vmatpush.msra.mxu0 0.0
      %335 = vmatpush.msra.mxu0 0.0
      %336 = vmatpush.msra.mxu0 0.0
      %337 = vmatpush.msra.mxu0 0.0
      %338 = vmatpush.msra.mxu0 0.0
      %339 = vmatpush.msra.mxu0 0.0
      %340 = vmatpush.msra.mxu0 0.0
      %341 = vmatpush.msra.mxu0 0.0
      %342 = vmatpush.msra.mxu0 0.0
      %343 = vmatpush.msra.mxu0 0.0
      %344 = vmatpush.msra.mxu0 0.0
      %345 = vmatpush.msra.mxu0 0.0
      %346 = vmatpush.msra.mxu0 0.0
      %347 = vmatpush.msra.mxu0 %v330
      %348 = vmatmul.f32.gmra.mxu0 %v296
      %v349 = vpop.f32.mrf.mxu0
      %v350 = vadd.f32 0.0, %v349
      %351 = vmatmul.f32.gmra.mxu0 %v298
      %v352 = vpop.f32.mrf.mxu0
      %v353 = vadd.f32 0.0, %v352
      %354 = vmatmul.f32.gmra.mxu0 %v300
      %v355 = vpop.f32.mrf.mxu0
      %v356 = vadd.f32 0.0, %v355
      %357 = vmatmul.f32.gmra.mxu0 %v302
      %v358 = vpop.f32.mrf.mxu0
      %v359 = vadd.f32 0.0, %v358
      %360 = vmatmul.f32.gmra.mxu0 %v304
      %v361 = vpop.f32.mrf.mxu0
      %v362 = vadd.f32 0.0, %v361
      %363 = vmatmul.f32.gmra.mxu0 %v306
      %v364 = vpop.f32.mrf.mxu0
      %v365 = vadd.f32 0.0, %v364
      %366 = vmatmul.f32.gmra.mxu0 %v308
      %v367 = vpop.f32.mrf.mxu0
      %v368 = vadd.f32 0.0, %v367
      %369 = vmatmul.f32.gmra.mxu0 %v310
      %v370 = vpop.f32.mrf.mxu0
      %v371 = vadd.f32 0.0, %v370
      %372 = vmatmul.f32.gmra.mxu0 %v312
      %v373 = vpop.f32.mrf.mxu0
      %v374 = vadd.f32 0.0, %v373
      %375 = vmatmul.f32.gmra.mxu0 %v314
      %v376 = vpop.f32.mrf.mxu0
      %v377 = vadd.f32 0.0, %v376
      %378 = vmatmul.f32.gmra.mxu0 %v316
      %v379 = vpop.f32.mrf.mxu0
      %v380 = vadd.f32 0.0, %v379
      %381 = vmatmul.f32.gmra.mxu0 %v318
      %v382 = vpop.f32.mrf.mxu0
      %v383 = vadd.f32 0.0, %v382
      %384 = vmatmul.f32.gmra.mxu0 %v320
      %v385 = vpop.f32.mrf.mxu0
      %v386 = vadd.f32 0.0, %v385
      %387 = vmatmul.f32.gmra.mxu0 %v322
      %v388 = vpop.f32.mrf.mxu0
      %v389 = vadd.f32 0.0, %v388
      %390 = vmatmul.f32.gmra.mxu0 %v324
      %v391 = vpop.f32.mrf.mxu0
      %v392 = vadd.f32 0.0, %v391
      %393 = vmatmul.f32.gmra.mxu0 %v326
      %v394 = vpop.f32.mrf.mxu0
      %v395 = vadd.f32 0.0, %v394
      %396 = vdwg.mxu0
      %v397 = vsel %vm295, %v197, 0
      %v399 = vsel %vm295, %v198, 0
      %v401 = vsel %vm295, %v200, 0
      %v403 = vsel %vm295, %v201, 0
      %v405 = vsel %vm295, %v203, 0
      %v407 = vsel %vm295, %v204, 0
      %v409 = vsel %vm295, %v206, 0
      %v411 = vsel %vm295, %v207, 0
      %v413 = vsel %vm295, %v209, 0
      %v415 = vsel %vm295, %v210, 0
      %v417 = vsel %vm295, %v212, 0
      %v419 = vsel %vm295, %v213, 0
      %v421 = vsel %vm295, %v215, 0
      %v423 = vsel %vm295, %v216, 0
      %v425 = vsel %vm295, %v218, 0
      %v427 = vsel %vm295, %v219, 0
      %v430 = vsel %vm328, %v227, 0
      %432 = vmatpush.msra.mxu0 0.0
      %433 = vmatpush.msra.mxu0 0.0
      %434 = vmatpush.msra.mxu0 0.0
      %435 = vmatpush.msra.mxu0 0.0
      %436 = vmatpush.msra.mxu0 0.0
      %437 = vmatpush.msra.mxu0 0.0
      %438 = vmatpush.msra.mxu0 0.0
      %439 = vmatpush.msra.mxu0 0.0
      %440 = vmatpush.msra.mxu0 0.0
      %441 = vmatpush.msra.mxu0 0.0
      %442 = vmatpush.msra.mxu0 0.0
      %443 = vmatpush.msra.mxu0 0.0
      %444 = vmatpush.msra.mxu0 0.0
      %445 = vmatpush.msra.mxu0 0.0
      %446 = vmatpush.msra.mxu0 0.0
      %447 = vmatpush.msra.mxu0 %v430
      %448 = vmatmul.f32.gmra.mxu0 %v397
      %v449 = vpop.f32.mrf.mxu0
      %v450 = vadd.f32 %v350, %v449
      %451 = vmatmul.f32.gmra.mxu0 %v399
      %v452 = vpop.f32.mrf.mxu0
      %v453 = vadd.f32 %v353, %v452
      %454 = vmatmul.f32.gmra.mxu0 %v401
      %v455 = vpop.f32.mrf.mxu0
      %v456 = vadd.f32 %v356, %v455
      %457 = vmatmul.f32.gmra.mxu0 %v403
      %v458 = vpop.f32.mrf.mxu0
      %v459 = vadd.f32 %v359, %v458
      %460 = vmatmul.f32.gmra.mxu0 %v405
      %v461 = vpop.f32.mrf.mxu0
      %v462 = vadd.f32 %v362, %v461
      %463 = vmatmul.f32.gmra.mxu0 %v407
      %v464 = vpop.f32.mrf.mxu0
      %v465 = vadd.f32 %v365, %v464
      %466 = vmatmul.f32.gmra.mxu0 %v409
      %v467 = vpop.f32.mrf.mxu0
      %v468 = vadd.f32 %v368, %v467
      %469 = vmatmul.f32.gmra.mxu0 %v411
      %v470 = vpop.f32.mrf.mxu0
      %v471 = vadd.f32 %v371, %v470
      %472 = vmatmul.f32.gmra.mxu0 %v413
      %v473 = vpop.f32.mrf.mxu0
      %v474 = vadd.f32 %v374, %v473
      %475 = vmatmul.f32.gmra.mxu0 %v415
      %v476 = vpop.f32.mrf.mxu0
      %v477 = vadd.f32 %v377, %v476
      %478 = vmatmul.f32.gmra.mxu0 %v417
      %v479 = vpop.f32.mrf.mxu0
      %v480 = vadd.f32 %v380, %v479
      %481 = vmatmul.f32.gmra.mxu0 %v419
      %v482 = vpop.f32.mrf.mxu0
      %v483 = vadd.f32 %v383, %v482
      %484 = vmatmul.f32.gmra.mxu0 %v421
      %v485 = vpop.f32.mrf.mxu0
      %v486 = vadd.f32 %v386, %v485
      %487 = vmatmul.f32.gmra.mxu0 %v423
      %v488 = vpop.f32.mrf.mxu0
      %v489 = vadd.f32 %v389, %v488
      %490 = vmatmul.f32.gmra.mxu0 %v425
      %v491 = vpop.f32.mrf.mxu0
      %v492 = vadd.f32 %v392, %v491
      %493 = vmatmul.f32.gmra.mxu0 %v427
      %v494 = vpop.f32.mrf.mxu0
      %v495 = vadd.f32 %v395, %v494
      %496 = vdwg.mxu0
      %vm497 = vcmask 1045504
      %v498 = vrot.slane %v197, 2
      %v499 = vrot.slane %v198, 2
      %v500 = vsel %vm497, %v498, %v499
      %v501 = vrot.slane %v199, 2
      %v502 = vsel %vm497, %v499, %v501
      %v503 = vrot.slane %v200, 2
      %v504 = vrot.slane %v201, 2
      %v505 = vsel %vm497, %v503, %v504
      %v506 = vrot.slane %v202, 2
      %v507 = vsel %vm497, %v504, %v506
      %v508 = vrot.slane %v203, 2
      %v509 = vrot.slane %v204, 2
      %v510 = vsel %vm497, %v508, %v509
      %v511 = vrot.slane %v205, 2
      %v512 = vsel %vm497, %v509, %v511
      %v513 = vrot.slane %v206, 2
      %v514 = vrot.slane %v207, 2
      %v515 = vsel %vm497, %v513, %v514
      %v516 = vrot.slane %v208, 2
      %v517 = vsel %vm497, %v514, %v516
      %v518 = vrot.slane %v209, 2
      %v519 = vrot.slane %v210, 2
      %v520 = vsel %vm497, %v518, %v519
      %v521 = vrot.slane %v211, 2
      %v522 = vsel %vm497, %v519, %v521
      %v523 = vrot.slane %v212, 2
      %v524 = vrot.slane %v213, 2
      %v525 = vsel %vm497, %v523, %v524
      %v526 = vrot.slane %v214, 2
      %v527 = vsel %vm497, %v524, %v526
      %v528 = vrot.slane %v215, 2
      %v529 = vrot.slane %v216, 2
      %v530 = vsel %vm497, %v528, %v529
      %v531 = vrot.slane %v217, 2
      %v532 = vsel %vm497, %v529, %v531
      %v533 = vrot.slane %v218, 2
      %v534 = vrot.slane %v219, 2
      %v535 = vsel %vm497, %v533, %v534
      %v536 = vrot.slane %v220, 2
      %v537 = vsel %vm497, %v534, %v536
      %s538 = scalar_lea.vmem %s1, 8
      %v539 = vld [vmem:[%s538] sm:$0xf]
      %v540 = vsel %vm295, %v500, 0
      %v542 = vsel %vm295, %v502, 0
      %v544 = vsel %vm295, %v505, 0
      %v546 = vsel %vm295, %v507, 0
      %v548 = vsel %vm295, %v510, 0
      %v550 = vsel %vm295, %v512, 0
      %v552 = vsel %vm295, %v515, 0
      %v554 = vsel %vm295, %v517, 0
      %v556 = vsel %vm295, %v520, 0
      %v558 = vsel %vm295, %v522, 0
      %v560 = vsel %vm295, %v525, 0
      %v562 = vsel %vm295, %v527, 0
      %v564 = vsel %vm295, %v530, 0
      %v566 = vsel %vm295, %v532, 0
      %v568 = vsel %vm295, %v535, 0
      %v570 = vsel %vm295, %v537, 0
      %v573 = vsel %vm328, %v539, 0
      %575 = vmatpush.msra.mxu0 0.0
      %576 = vmatpush.msra.mxu0 0.0
      %577 = vmatpush.msra.mxu0 0.0
      %578 = vmatpush.msra.mxu0 0.0
      %579 = vmatpush.msra.mxu0 0.0
      %580 = vmatpush.msra.mxu0 0.0
      %581 = vmatpush.msra.mxu0 0.0
      %582 = vmatpush.msra.mxu0 0.0
      %583 = vmatpush.msra.mxu0 0.0
      %584 = vmatpush.msra.mxu0 0.0
      %585 = vmatpush.msra.mxu0 0.0
      %586 = vmatpush.msra.mxu0 0.0
      %587 = vmatpush.msra.mxu0 0.0
      %588 = vmatpush.msra.mxu0 0.0
      %589 = vmatpush.msra.mxu0 0.0
      %590 = vmatpush.msra.mxu0 %v573
      %591 = vmatmul.f32.gmra.mxu0 %v540
      %v592 = vpop.f32.mrf.mxu0
      %v593 = vadd.f32 0.0, %v592
      %594 = vmatmul.f32.gmra.mxu0 %v542
      %v595 = vpop.f32.mrf.mxu0
      %v596 = vadd.f32 0.0, %v595
      %597 = vmatmul.f32.gmra.mxu0 %v544
      %v598 = vpop.f32.mrf.mxu0
      %v599 = vadd.f32 0.0, %v598
      %600 = vmatmul.f32.gmra.mxu0 %v546
      %v601 = vpop.f32.mrf.mxu0
      %v602 = vadd.f32 0.0, %v601
      %603 = vmatmul.f32.gmra.mxu0 %v548
      %v604 = vpop.f32.mrf.mxu0
      %v605 = vadd.f32 0.0, %v604
      %606 = vmatmul.f32.gmra.mxu0 %v550
      %v607 = vpop.f32.mrf.mxu0
      %v608 = vadd.f32 0.0, %v607
      %609 = vmatmul.f32.gmra.mxu0 %v552
      %v610 = vpop.f32.mrf.mxu0
      %v611 = vadd.f32 0.0, %v610
      %612 = vmatmul.f32.gmra.mxu0 %v554
      %v613 = vpop.f32.mrf.mxu0
      %v614 = vadd.f32 0.0, %v613
      %615 = vmatmul.f32.gmra.mxu0 %v556
      %v616 = vpop.f32.mrf.mxu0
      %v617 = vadd.f32 0.0, %v616
      %618 = vmatmul.f32.gmra.mxu0 %v558
      %v619 = vpop.f32.mrf.mxu0
      %v620 = vadd.f32 0.0, %v619
      %621 = vmatmul.f32.gmra.mxu0 %v560
      %v622 = vpop.f32.mrf.mxu0
      %v623 = vadd.f32 0.0, %v622
      %624 = vmatmul.f32.gmra.mxu0 %v562
      %v625 = vpop.f32.mrf.mxu0
      %v626 = vadd.f32 0.0, %v625
      %627 = vmatmul.f32.gmra.mxu0 %v564
      %v628 = vpop.f32.mrf.mxu0
      %v629 = vadd.f32 0.0, %v628
      %630 = vmatmul.f32.gmra.mxu0 %v566
      %v631 = vpop.f32.mrf.mxu0
      %v632 = vadd.f32 0.0, %v631
      %633 = vmatmul.f32.gmra.mxu0 %v568
      %v634 = vpop.f32.mrf.mxu0
      %v635 = vadd.f32 0.0, %v634
      %636 = vmatmul.f32.gmra.mxu0 %v570
      %v637 = vpop.f32.mrf.mxu0
      %v638 = vadd.f32 0.0, %v637
      %639 = vdwg.mxu0
      %v640 = vadd.f32 %v450, %v593
      %v641 = vadd.f32 %v453, %v596
      %v642 = vadd.f32 %v456, %v599
      %v643 = vadd.f32 %v459, %v602
      %v644 = vadd.f32 %v462, %v605
      %v645 = vadd.f32 %v465, %v608
      %v646 = vadd.f32 %v468, %v611
      %v647 = vadd.f32 %v471, %v614
      %v648 = vadd.f32 %v474, %v617
      %v649 = vadd.f32 %v477, %v620
      %v650 = vadd.f32 %v480, %v623
      %v651 = vadd.f32 %v483, %v626
      %v652 = vadd.f32 %v486, %v629
      %v653 = vadd.f32 %v489, %v632
      %v654 = vadd.f32 %v492, %v635
      %v655 = vadd.f32 %v495, %v638
      %s656 = scalar_lea.vmem %s1, 12
      %v657 = vld [vmem:[%s656] sm:$0xf]
      %v659 = vsel %vm295, %v221, 0
      %v662 = vsel %vm295, %v222, 0
      %v665 = vsel %vm328, %v657, 0
      %667 = vmatpush.msra.mxu0 0.0
      %668 = vmatpush.msra.mxu0 0.0
      %669 = vmatpush.msra.mxu0 0.0
      %670 = vmatpush.msra.mxu0 0.0
      %671 = vmatpush.msra.mxu0 0.0
      %672 = vmatpush.msra.mxu0 0.0
      %673 = vmatpush.msra.mxu0 0.0
      %674 = vmatpush.msra.mxu0 0.0
      %675 = vmatpush.msra.mxu0 0.0
      %676 = vmatpush.msra.mxu0 0.0
      %677 = vmatpush.msra.mxu0 0.0
      %678 = vmatpush.msra.mxu0 0.0
      %679 = vmatpush.msra.mxu0 0.0
      %680 = vmatpush.msra.mxu0 0.0
      %681 = vmatpush.msra.mxu0 0.0
      %682 = vmatpush.msra.mxu0 %v665
      %683 = vmatmul.f32.gmra.mxu0 %v401
      %v684 = vpop.f32.mrf.mxu0
      %v685 = vadd.f32 0.0, %v684
      %686 = vmatmul.f32.gmra.mxu0 %v403
      %v687 = vpop.f32.mrf.mxu0
      %v688 = vadd.f32 0.0, %v687
      %689 = vmatmul.f32.gmra.mxu0 %v405
      %v690 = vpop.f32.mrf.mxu0
      %v691 = vadd.f32 0.0, %v690
      %692 = vmatmul.f32.gmra.mxu0 %v407
      %v693 = vpop.f32.mrf.mxu0
      %v694 = vadd.f32 0.0, %v693
      %695 = vmatmul.f32.gmra.mxu0 %v409
      %v696 = vpop.f32.mrf.mxu0
      %v697 = vadd.f32 0.0, %v696
      %698 = vmatmul.f32.gmra.mxu0 %v411
      %v699 = vpop.f32.mrf.mxu0
      %v700 = vadd.f32 0.0, %v699
      %701 = vmatmul.f32.gmra.mxu0 %v413
      %v702 = vpop.f32.mrf.mxu0
      %v703 = vadd.f32 0.0, %v702
      %704 = vmatmul.f32.gmra.mxu0 %v415
      %v705 = vpop.f32.mrf.mxu0
      %v706 = vadd.f32 0.0, %v705
      %707 = vmatmul.f32.gmra.mxu0 %v417
      %v708 = vpop.f32.mrf.mxu0
      %v709 = vadd.f32 0.0, %v708
      %710 = vmatmul.f32.gmra.mxu0 %v419
      %v711 = vpop.f32.mrf.mxu0
      %v712 = vadd.f32 0.0, %v711
      %713 = vmatmul.f32.gmra.mxu0 %v421
      %v714 = vpop.f32.mrf.mxu0
      %v715 = vadd.f32 0.0, %v714
      %716 = vmatmul.f32.gmra.mxu0 %v423
      %v717 = vpop.f32.mrf.mxu0
      %v718 = vadd.f32 0.0, %v717
      %719 = vmatmul.f32.gmra.mxu0 %v425
      %v720 = vpop.f32.mrf.mxu0
      %v721 = vadd.f32 0.0, %v720
      %722 = vmatmul.f32.gmra.mxu0 %v427
      %v723 = vpop.f32.mrf.mxu0
      %v724 = vadd.f32 0.0, %v723
      %725 = vmatmul.f32.gmra.mxu0 %v659
      %v726 = vpop.f32.mrf.mxu0
      %v727 = vadd.f32 0.0, %v726
      %728 = vmatmul.f32.gmra.mxu0 %v662
      %v729 = vpop.f32.mrf.mxu0
      %v730 = vadd.f32 0.0, %v729
      %731 = vdwg.mxu0
      %v732 = vadd.f32 %v640, %v685
      %v733 = vadd.f32 %v641, %v688
      %v734 = vadd.f32 %v642, %v691
      %v735 = vadd.f32 %v643, %v694
      %v736 = vadd.f32 %v644, %v697
      %v737 = vadd.f32 %v645, %v700
      %v738 = vadd.f32 %v646, %v703
      %v739 = vadd.f32 %v647, %v706
      %v740 = vadd.f32 %v648, %v709
      %v741 = vadd.f32 %v649, %v712
      %v742 = vadd.f32 %v650, %v715
      %v743 = vadd.f32 %v651, %v718
      %v744 = vadd.f32 %v652, %v721
      %v745 = vadd.f32 %v653, %v724
      %v746 = vadd.f32 %v654, %v727
      %v747 = vadd.f32 %v655, %v730
      %v749 = vrot.slane %v221, 1
      %v750 = vrot.slane %v222, 1
      %v751 = vsel %vm252, %v749, %v750
      %v752 = vrot.slane %v223, 1
      %v753 = vsel %vm252, %v750, %v752
      %s754 = scalar_lea.vmem %s1, 16
      %v755 = vld [vmem:[%s754] sm:$0xf]
      %v756 = vsel %vm295, %v751, 0
      %v758 = vsel %vm295, %v753, 0
      %v761 = vsel %vm328, %v755, 0
      %763 = vmatpush.msra.mxu0 0.0
      %764 = vmatpush.msra.mxu0 0.0
      %765 = vmatpush.msra.mxu0 0.0
      %766 = vmatpush.msra.mxu0 0.0
      %767 = vmatpush.msra.mxu0 0.0
      %768 = vmatpush.msra.mxu0 0.0
      %769 = vmatpush.msra.mxu0 0.0
      %770 = vmatpush.msra.mxu0 0.0
      %771 = vmatpush.msra.mxu0 0.0
      %772 = vmatpush.msra.mxu0 0.0
      %773 = vmatpush.msra.mxu0 0.0
      %774 = vmatpush.msra.mxu0 0.0
      %775 = vmatpush.msra.mxu0 0.0
      %776 = vmatpush.msra.mxu0 0.0
      %777 = vmatpush.msra.mxu0 0.0
      %778 = vmatpush.msra.mxu0 %v761
      %779 = vmatmul.f32.gmra.mxu0 %v300
      %v780 = vpop.f32.mrf.mxu0
      %v781 = vadd.f32 0.0, %v780
      %782 = vmatmul.f32.gmra.mxu0 %v302
      %v783 = vpop.f32.mrf.mxu0
      %v784 = vadd.f32 0.0, %v783
      %785 = vmatmul.f32.gmra.mxu0 %v304
      %v786 = vpop.f32.mrf.mxu0
      %v787 = vadd.f32 0.0, %v786
      %788 = vmatmul.f32.gmra.mxu0 %v306
      %v789 = vpop.f32.mrf.mxu0
      %v790 = vadd.f32 0.0, %v789
      %791 = vmatmul.f32.gmra.mxu0 %v308
      %v792 = vpop.f32.mrf.mxu0
      %v793 = vadd.f32 0.0, %v792
      %794 = vmatmul.f32.gmra.mxu0 %v310
      %v795 = vpop.f32.mrf.mxu0
      %v796 = vadd.f32 0.0, %v795
      %797 = vmatmul.f32.gmra.mxu0 %v312
      %v798 = vpop.f32.mrf.mxu0
      %v799 = vadd.f32 0.0, %v798
      %800 = vmatmul.f32.gmra.mxu0 %v314
      %v801 = vpop.f32.mrf.mxu0
      %v802 = vadd.f32 0.0, %v801
      %803 = vmatmul.f32.gmra.mxu0 %v316
      %v804 = vpop.f32.mrf.mxu0
      %v805 = vadd.f32 0.0, %v804
      %806 = vmatmul.f32.gmra.mxu0 %v318
      %v807 = vpop.f32.mrf.mxu0
      %v808 = vadd.f32 0.0, %v807
      %809 = vmatmul.f32.gmra.mxu0 %v320
      %v810 = vpop.f32.mrf.mxu0
      %v811 = vadd.f32 0.0, %v810
      %812 = vmatmul.f32.gmra.mxu0 %v322
      %v813 = vpop.f32.mrf.mxu0
      %v814 = vadd.f32 0.0, %v813
      %815 = vmatmul.f32.gmra.mxu0 %v324
      %v816 = vpop.f32.mrf.mxu0
      %v817 = vadd.f32 0.0, %v816
      %818 = vmatmul.f32.gmra.mxu0 %v326
      %v819 = vpop.f32.mrf.mxu0
      %v820 = vadd.f32 0.0, %v819
      %821 = vmatmul.f32.gmra.mxu0 %v756
      %v822 = vpop.f32.mrf.mxu0
      %v823 = vadd.f32 0.0, %v822
      %824 = vmatmul.f32.gmra.mxu0 %v758
      %v825 = vpop.f32.mrf.mxu0
      %v826 = vadd.f32 0.0, %v825
      %827 = vdwg.mxu0
      %v828 = vadd.f32 %v732, %v781
      %v829 = vadd.f32 %v733, %v784
      %v830 = vadd.f32 %v734, %v787
      %v831 = vadd.f32 %v735, %v790
      %v832 = vadd.f32 %v736, %v793
      %v833 = vadd.f32 %v737, %v796
      %v834 = vadd.f32 %v738, %v799
      %v835 = vadd.f32 %v739, %v802
      %v836 = vadd.f32 %v740, %v805
      %v837 = vadd.f32 %v741, %v808
      %v838 = vadd.f32 %v742, %v811
      %v839 = vadd.f32 %v743, %v814
      %v840 = vadd.f32 %v744, %v817
      %v841 = vadd.f32 %v745, %v820
      %v842 = vadd.f32 %v746, %v823
      %v843 = vadd.f32 %v747, %v826
      %v844 = vrot.slane %v221, 2
      %v845 = vrot.slane %v222, 2
      %v846 = vsel %vm497, %v844, %v845
      %v847 = vrot.slane %v223, 2
      %v848 = vsel %vm497, %v845, %v847
      %s849 = scalar_lea.vmem %s1, 20
      %v850 = vld [vmem:[%s849] sm:$0xf]
      %v851 = vsel %vm295, %v846, 0
      %v853 = vsel %vm295, %v848, 0
      %v856 = vsel %vm328, %v850, 0
      %858 = vmatpush.msra.mxu0 0.0
      %859 = vmatpush.msra.mxu0 0.0
      %860 = vmatpush.msra.mxu0 0.0
      %861 = vmatpush.msra.mxu0 0.0
      %862 = vmatpush.msra.mxu0 0.0
      %863 = vmatpush.msra.mxu0 0.0
      %864 = vmatpush.msra.mxu0 0.0
      %865 = vmatpush.msra.mxu0 0.0
      %866 = vmatpush.msra.mxu0 0.0
      %867 = vmatpush.msra.mxu0 0.0
      %868 = vmatpush.msra.mxu0 0.0
      %869 = vmatpush.msra.mxu0 0.0
      %870 = vmatpush.msra.mxu0 0.0
      %871 = vmatpush.msra.mxu0 0.0
      %872 = vmatpush.msra.mxu0 0.0
      %873 = vmatpush.msra.mxu0 %v856
      %874 = vmatmul.f32.gmra.mxu0 %v544
      %v875 = vpop.f32.mrf.mxu0
      %v876 = vadd.f32 0.0, %v875
      %877 = vmatmul.f32.gmra.mxu0 %v546
      %v878 = vpop.f32.mrf.mxu0
      %v879 = vadd.f32 0.0, %v878
      %880 = vmatmul.f32.gmra.mxu0 %v548
      %v881 = vpop.f32.mrf.mxu0
      %v882 = vadd.f32 0.0, %v881
      %883 = vmatmul.f32.gmra.mxu0 %v550
      %v884 = vpop.f32.mrf.mxu0
      %v885 = vadd.f32 0.0, %v884
      %886 = vmatmul.f32.gmra.mxu0 %v552
      %v887 = vpop.f32.mrf.mxu0
      %v888 = vadd.f32 0.0, %v887
      %889 = vmatmul.f32.gmra.mxu0 %v554
      %v890 = vpop.f32.mrf.mxu0
      %v891 = vadd.f32 0.0, %v890
      %892 = vmatmul.f32.gmra.mxu0 %v556
      %v893 = vpop.f32.mrf.mxu0
      %v894 = vadd.f32 0.0, %v893
      %895 = vmatmul.f32.gmra.mxu0 %v558
      %v896 = vpop.f32.mrf.mxu0
      %v897 = vadd.f32 0.0, %v896
      %898 = vmatmul.f32.gmra.mxu0 %v560
      %v899 = vpop.f32.mrf.mxu0
      %v900 = vadd.f32 0.0, %v899
      %901 = vmatmul.f32.gmra.mxu0 %v562
      %v902 = vpop.f32.mrf.mxu0
      %v903 = vadd.f32 0.0, %v902
      %904 = vmatmul.f32.gmra.mxu0 %v564
      %v905 = vpop.f32.mrf.mxu0
      %v906 = vadd.f32 0.0, %v905
      %907 = vmatmul.f32.gmra.mxu0 %v566
      %v908 = vpop.f32.mrf.mxu0
      %v909 = vadd.f32 0.0, %v908
      %910 = vmatmul.f32.gmra.mxu0 %v568
      %v911 = vpop.f32.mrf.mxu0
      %v912 = vadd.f32 0.0, %v911
      %913 = vmatmul.f32.gmra.mxu0 %v570
      %v914 = vpop.f32.mrf.mxu0
      %v915 = vadd.f32 0.0, %v914
      %916 = vmatmul.f32.gmra.mxu0 %v851
      %v917 = vpop.f32.mrf.mxu0
      %v918 = vadd.f32 0.0, %v917
      %919 = vmatmul.f32.gmra.mxu0 %v853
      %v920 = vpop.f32.mrf.mxu0
      %v921 = vadd.f32 0.0, %v920
      %922 = vdwg.mxu0
      %v923 = vadd.f32 %v828, %v876
      %v924 = vadd.f32 %v829, %v879
      %v925 = vadd.f32 %v830, %v882
      %v926 = vadd.f32 %v831, %v885
      %v927 = vadd.f32 %v832, %v888
      %v928 = vadd.f32 %v833, %v891
      %v929 = vadd.f32 %v834, %v894
      %v930 = vadd.f32 %v835, %v897
      %v931 = vadd.f32 %v836, %v900
      %v932 = vadd.f32 %v837, %v903
      %v933 = vadd.f32 %v838, %v906
      %v934 = vadd.f32 %v839, %v909
      %v935 = vadd.f32 %v840, %v912
      %v936 = vadd.f32 %v841, %v915
      %v937 = vadd.f32 %v842, %v918
      %v938 = vadd.f32 %v843, %v921
      %s939 = scalar_lea.vmem %s1, 24
      %v940 = vld [vmem:[%s939] sm:$0xf]
      %v942 = vsel %vm295, %v224, 0
      %v945 = vsel %vm295, %v225, 0
      %v948 = vsel %vm328, %v940, 0
      %950 = vmatpush.msra.mxu0 0.0
      %951 = vmatpush.msra.mxu0 0.0
      %952 = vmatpush.msra.mxu0 0.0
      %953 = vmatpush.msra.mxu0 0.0
      %954 = vmatpush.msra.mxu0 0.0
      %955 = vmatpush.msra.mxu0 0.0
      %956 = vmatpush.msra.mxu0 0.0
      %957 = vmatpush.msra.mxu0 0.0
      %958 = vmatpush.msra.mxu0 0.0
      %959 = vmatpush.msra.mxu0 0.0
      %960 = vmatpush.msra.mxu0 0.0
      %961 = vmatpush.msra.mxu0 0.0
      %962 = vmatpush.msra.mxu0 0.0
      %963 = vmatpush.msra.mxu0 0.0
      %964 = vmatpush.msra.mxu0 0.0
      %965 = vmatpush.msra.mxu0 %v948
      %966 = vmatmul.f32.gmra.mxu0 %v405
      %v967 = vpop.f32.mrf.mxu0
      %v968 = vadd.f32 0.0, %v967
      %969 = vmatmul.f32.gmra.mxu0 %v407
      %v970 = vpop.f32.mrf.mxu0
      %v971 = vadd.f32 0.0, %v970
      %972 = vmatmul.f32.gmra.mxu0 %v409
      %v973 = vpop.f32.mrf.mxu0
      %v974 = vadd.f32 0.0, %v973
      %975 = vmatmul.f32.gmra.mxu0 %v411
      %v976 = vpop.f32.mrf.mxu0
      %v977 = vadd.f32 0.0, %v976
      %978 = vmatmul.f32.gmra.mxu0 %v413
      %v979 = vpop.f32.mrf.mxu0
      %v980 = vadd.f32 0.0, %v979
      %981 = vmatmul.f32.gmra.mxu0 %v415
      %v982 = vpop.f32.mrf.mxu0
      %v983 = vadd.f32 0.0, %v982
      %984 = vmatmul.f32.gmra.mxu0 %v417
      %v985 = vpop.f32.mrf.mxu0
      %v986 = vadd.f32 0.0, %v985
      %987 = vmatmul.f32.gmra.mxu0 %v419
      %v988 = vpop.f32.mrf.mxu0
      %v989 = vadd.f32 0.0, %v988
      %990 = vmatmul.f32.gmra.mxu0 %v421
      %v991 = vpop.f32.mrf.mxu0
      %v992 = vadd.f32 0.0, %v991
      %993 = vmatmul.f32.gmra.mxu0 %v423
      %v994 = vpop.f32.mrf.mxu0
      %v995 = vadd.f32 0.0, %v994
      %996 = vmatmul.f32.gmra.mxu0 %v425
      %v997 = vpop.f32.mrf.mxu0
      %v998 = vadd.f32 0.0, %v997
      %999 = vmatmul.f32.gmra.mxu0 %v427
      %v1000 = vpop.f32.mrf.mxu0
      %v1001 = vadd.f32 0.0, %v1000
      %1002 = vmatmul.f32.gmra.mxu0 %v659
      %v1003 = vpop.f32.mrf.mxu0
      %v1004 = vadd.f32 0.0, %v1003
      %1005 = vmatmul.f32.gmra.mxu0 %v662
      %v1006 = vpop.f32.mrf.mxu0
      %v1007 = vadd.f32 0.0, %v1006
      %1008 = vmatmul.f32.gmra.mxu0 %v942
      %v1009 = vpop.f32.mrf.mxu0
      %v1010 = vadd.f32 0.0, %v1009
      %1011 = vmatmul.f32.gmra.mxu0 %v945
      %v1012 = vpop.f32.mrf.mxu0
      %v1013 = vadd.f32 0.0, %v1012
      %1014 = vdwg.mxu0
      %v1015 = vadd.f32 %v923, %v968
      %v1016 = vadd.f32 %v924, %v971
      %v1017 = vadd.f32 %v925, %v974
      %v1018 = vadd.f32 %v926, %v977
      %v1019 = vadd.f32 %v927, %v980
      %v1020 = vadd.f32 %v928, %v983
      %v1021 = vadd.f32 %v929, %v986
      %v1022 = vadd.f32 %v930, %v989
      %v1023 = vadd.f32 %v931, %v992
      %v1024 = vadd.f32 %v932, %v995
      %v1025 = vadd.f32 %v933, %v998
      %v1026 = vadd.f32 %v934, %v1001
      %v1027 = vadd.f32 %v935, %v1004
      %v1028 = vadd.f32 %v936, %v1007
      %v1029 = vadd.f32 %v937, %v1010
      %v1030 = vadd.f32 %v938, %v1013
      %v1032 = vrot.slane %v224, 1
      %v1033 = vrot.slane %v225, 1
      %v1034 = vsel %vm252, %v1032, %v1033
      %v1035 = vrot.slane %v226, 1
      %v1036 = vsel %vm252, %v1033, %v1035
      %s1037 = scalar_lea.vmem %s1, 28
      %v1038 = vld [vmem:[%s1037] sm:$0xf]
      %v1039 = vsel %vm295, %v1034, 0
      %v1041 = vsel %vm295, %v1036, 0
      %v1044 = vsel %vm328, %v1038, 0
      %1046 = vmatpush.msra.mxu0 0.0
      %1047 = vmatpush.msra.mxu0 0.0
      %1048 = vmatpush.msra.mxu0 0.0
      %1049 = vmatpush.msra.mxu0 0.0
      %1050 = vmatpush.msra.mxu0 0.0
      %1051 = vmatpush.msra.mxu0 0.0
      %1052 = vmatpush.msra.mxu0 0.0
      %1053 = vmatpush.msra.mxu0 0.0
      %1054 = vmatpush.msra.mxu0 0.0
      %1055 = vmatpush.msra.mxu0 0.0
      %1056 = vmatpush.msra.mxu0 0.0
      %1057 = vmatpush.msra.mxu0 0.0
      %1058 = vmatpush.msra.mxu0 0.0
      %1059 = vmatpush.msra.mxu0 0.0
      %1060 = vmatpush.msra.mxu0 0.0
      %1061 = vmatpush.msra.mxu0 %v1044
      %1062 = vmatmul.f32.gmra.mxu0 %v304
      %v1063 = vpop.f32.mrf.mxu0
      %v1064 = vadd.f32 0.0, %v1063
      %1065 = vmatmul.f32.gmra.mxu0 %v306
      %v1066 = vpop.f32.mrf.mxu0
      %v1067 = vadd.f32 0.0, %v1066
      %1068 = vmatmul.f32.gmra.mxu0 %v308
      %v1069 = vpop.f32.mrf.mxu0
      %v1070 = vadd.f32 0.0, %v1069
      %1071 = vmatmul.f32.gmra.mxu0 %v310
      %v1072 = vpop.f32.mrf.mxu0
      %v1073 = vadd.f32 0.0, %v1072
      %1074 = vmatmul.f32.gmra.mxu0 %v312
      %v1075 = vpop.f32.mrf.mxu0
      %v1076 = vadd.f32 0.0, %v1075
      %1077 = vmatmul.f32.gmra.mxu0 %v314
      %v1078 = vpop.f32.mrf.mxu0
      %v1079 = vadd.f32 0.0, %v1078
      %1080 = vmatmul.f32.gmra.mxu0 %v316
      %v1081 = vpop.f32.mrf.mxu0
      %v1082 = vadd.f32 0.0, %v1081
      %1083 = vmatmul.f32.gmra.mxu0 %v318
      %v1084 = vpop.f32.mrf.mxu0
      %v1085 = vadd.f32 0.0, %v1084
      %1086 = vmatmul.f32.gmra.mxu0 %v320
      %v1087 = vpop.f32.mrf.mxu0
      %v1088 = vadd.f32 0.0, %v1087
      %1089 = vmatmul.f32.gmra.mxu0 %v322
      %v1090 = vpop.f32.mrf.mxu0
      %v1091 = vadd.f32 0.0, %v1090
      %1092 = vmatmul.f32.gmra.mxu0 %v324
      %v1093 = vpop.f32.mrf.mxu0
      %v1094 = vadd.f32 0.0, %v1093
      %1095 = vmatmul.f32.gmra.mxu0 %v326
      %v1096 = vpop.f32.mrf.mxu0
      %v1097 = vadd.f32 0.0, %v1096
      %1098 = vmatmul.f32.gmra.mxu0 %v756
      %v1099 = vpop.f32.mrf.mxu0
      %v1100 = vadd.f32 0.0, %v1099
      %1101 = vmatmul.f32.gmra.mxu0 %v758
      %v1102 = vpop.f32.mrf.mxu0
      %v1103 = vadd.f32 0.0, %v1102
      %1104 = vmatmul.f32.gmra.mxu0 %v1039
      %v1105 = vpop.f32.mrf.mxu0
      %v1106 = vadd.f32 0.0, %v1105
      %1107 = vmatmul.f32.gmra.mxu0 %v1041
      %v1108 = vpop.f32.mrf.mxu0
      %v1109 = vadd.f32 0.0, %v1108
      %1110 = vdwg.mxu0
      %v1111 = vadd.f32 %v1015, %v1064
      %v1112 = vadd.f32 %v1016, %v1067
      %v1113 = vadd.f32 %v1017, %v1070
      %v1114 = vadd.f32 %v1018, %v1073
      %v1115 = vadd.f32 %v1019, %v1076
      %v1116 = vadd.f32 %v1020, %v1079
      %v1117 = vadd.f32 %v1021, %v1082
      %v1118 = vadd.f32 %v1022, %v1085
      %v1119 = vadd.f32 %v1023, %v1088
      %v1120 = vadd.f32 %v1024, %v1091
      %v1121 = vadd.f32 %v1025, %v1094
      %v1122 = vadd.f32 %v1026, %v1097
      %v1123 = vadd.f32 %v1027, %v1100
      %v1124 = vadd.f32 %v1028, %v1103
      %v1125 = vadd.f32 %v1029, %v1106
      %v1126 = vadd.f32 %v1030, %v1109
      %v1127 = vrot.slane %v224, 2
      %v1128 = vrot.slane %v225, 2
      %v1129 = vsel %vm497, %v1127, %v1128
      %v1130 = vrot.slane %v226, 2
      %v1131 = vsel %vm497, %v1128, %v1130
      %s1132 = scalar_lea.vmem %s1, 32
      %v1133 = vld [vmem:[%s1132] sm:$0xf]
      %v1134 = vsel %vm295, %v1129, 0
      %v1136 = vsel %vm295, %v1131, 0
      %v1139 = vsel %vm328, %v1133, 0
      %1141 = vmatpush.msra.mxu0 0.0
      %1142 = vmatpush.msra.mxu0 0.0
      %1143 = vmatpush.msra.mxu0 0.0
      %1144 = vmatpush.msra.mxu0 0.0
      %1145 = vmatpush.msra.mxu0 0.0
      %1146 = vmatpush.msra.mxu0 0.0
      %1147 = vmatpush.msra.mxu0 0.0
      %1148 = vmatpush.msra.mxu0 0.0
      %1149 = vmatpush.msra.mxu0 0.0
      %1150 = vmatpush.msra.mxu0 0.0
      %1151 = vmatpush.msra.mxu0 0.0
      %1152 = vmatpush.msra.mxu0 0.0
      %1153 = vmatpush.msra.mxu0 0.0
      %1154 = vmatpush.msra.mxu0 0.0
      %1155 = vmatpush.msra.mxu0 0.0
      %1156 = vmatpush.msra.mxu0 %v1139
      %1157 = vmatmul.f32.gmra.mxu0 %v548
      %v1158 = vpop.f32.mrf.mxu0
      %v1159 = vadd.f32 0.0, %v1158
      %1160 = vmatmul.f32.gmra.mxu0 %v550
      %v1161 = vpop.f32.mrf.mxu0
      %v1162 = vadd.f32 0.0, %v1161
      %1163 = vmatmul.f32.gmra.mxu0 %v552
      %v1164 = vpop.f32.mrf.mxu0
      %v1165 = vadd.f32 0.0, %v1164
      %1166 = vmatmul.f32.gmra.mxu0 %v554
      %v1167 = vpop.f32.mrf.mxu0
      %v1168 = vadd.f32 0.0, %v1167
      %1169 = vmatmul.f32.gmra.mxu0 %v556
      %v1170 = vpop.f32.mrf.mxu0
      %v1171 = vadd.f32 0.0, %v1170
      %1172 = vmatmul.f32.gmra.mxu0 %v558
      %v1173 = vpop.f32.mrf.mxu0
      %v1174 = vadd.f32 0.0, %v1173
      %1175 = vmatmul.f32.gmra.mxu0 %v560
      %v1176 = vpop.f32.mrf.mxu0
      %v1177 = vadd.f32 0.0, %v1176
      %1178 = vmatmul.f32.gmra.mxu0 %v562
      %v1179 = vpop.f32.mrf.mxu0
      %v1180 = vadd.f32 0.0, %v1179
      %1181 = vmatmul.f32.gmra.mxu0 %v564
      %v1182 = vpop.f32.mrf.mxu0
      %v1183 = vadd.f32 0.0, %v1182
      %1184 = vmatmul.f32.gmra.mxu0 %v566
      %v1185 = vpop.f32.mrf.mxu0
      %v1186 = vadd.f32 0.0, %v1185
      %1187 = vmatmul.f32.gmra.mxu0 %v568
      %v1188 = vpop.f32.mrf.mxu0
      %v1189 = vadd.f32 0.0, %v1188
      %1190 = vmatmul.f32.gmra.mxu0 %v570
      %v1191 = vpop.f32.mrf.mxu0
      %v1192 = vadd.f32 0.0, %v1191
      %1193 = vmatmul.f32.gmra.mxu0 %v851
      %v1194 = vpop.f32.mrf.mxu0
      %v1195 = vadd.f32 0.0, %v1194
      %1196 = vmatmul.f32.gmra.mxu0 %v853
      %v1197 = vpop.f32.mrf.mxu0
      %v1198 = vadd.f32 0.0, %v1197
      %1199 = vmatmul.f32.gmra.mxu0 %v1134
      %v1200 = vpop.f32.mrf.mxu0
      %v1201 = vadd.f32 0.0, %v1200
      %1202 = vmatmul.f32.gmra.mxu0 %v1136
      %v1203 = vpop.f32.mrf.mxu0
      %v1204 = vadd.f32 0.0, %v1203
      %1205 = vdwg.mxu0
      %v1206 = vadd.f32 %v1111, %v1159
      %v1207 = vadd.f32 %v1112, %v1162
      %v1208 = vadd.f32 %v1113, %v1165
      %v1209 = vadd.f32 %v1114, %v1168
      %v1210 = vadd.f32 %v1115, %v1171
      %v1211 = vadd.f32 %v1116, %v1174
      %v1212 = vadd.f32 %v1117, %v1177
      %v1213 = vadd.f32 %v1118, %v1180
      %v1214 = vadd.f32 %v1119, %v1183
      %v1215 = vadd.f32 %v1120, %v1186
      %v1216 = vadd.f32 %v1121, %v1189
      %v1217 = vadd.f32 %v1122, %v1192
      %v1218 = vadd.f32 %v1123, %v1195
      %v1219 = vadd.f32 %v1124, %v1198
      %v1220 = vadd.f32 %v1125, %v1201
      %v1221 = vadd.f32 %v1126, %v1204
      %v1222 = vld [vmem:[%s2] sm:$0x1]
      %v1224 = vperm.slane %v1222, 0
      %v1226 = vadd.f32 %v1206, %v1224
      %v1227 = vadd.f32 %v1207, %v1224
      %v1228 = vadd.f32 %v1208, %v1224
      %v1229 = vadd.f32 %v1209, %v1224
      %v1230 = vadd.f32 %v1210, %v1224
      %v1231 = vadd.f32 %v1211, %v1224
      %v1232 = vadd.f32 %v1212, %v1224
      %v1233 = vadd.f32 %v1213, %v1224
      %v1234 = vadd.f32 %v1214, %v1224
      %v1235 = vadd.f32 %v1215, %v1224
      %v1236 = vadd.f32 %v1216, %v1224
      %v1237 = vadd.f32 %v1217, %v1224
      %v1238 = vadd.f32 %v1218, %v1224
      %v1239 = vadd.f32 %v1219, %v1224
      %v1240 = vadd.f32 %v1220, %v1224
      %v1241 = vadd.f32 %v1221, %v1224
      %vm1242 = vcmp.gt.f32.partialorder %v1226, 0.0
      %vm1243 = vcmp.gt.f32.partialorder %v1227, 0.0
      %vm1244 = vcmp.gt.f32.partialorder %v1228, 0.0
      %vm1245 = vcmp.gt.f32.partialorder %v1229, 0.0
      %vm1246 = vcmp.gt.f32.partialorder %v1230, 0.0
      %vm1247 = vcmp.gt.f32.partialorder %v1231, 0.0
      %vm1248 = vcmp.gt.f32.partialorder %v1232, 0.0
      %vm1249 = vcmp.gt.f32.partialorder %v1233, 0.0
      %vm1250 = vcmp.gt.f32.partialorder %v1234, 0.0
      %vm1251 = vcmp.gt.f32.partialorder %v1235, 0.0
      %vm1252 = vcmp.gt.f32.partialorder %v1236, 0.0
      %vm1253 = vcmp.gt.f32.partialorder %v1237, 0.0
      %vm1254 = vcmp.gt.f32.partialorder %v1238, 0.0
      %vm1255 = vcmp.gt.f32.partialorder %v1239, 0.0
      %vm1256 = vcmp.gt.f32.partialorder %v1240, 0.0
      %vm1257 = vcmp.gt.f32.partialorder %v1241, 0.0
      %v1258 = vmul.f32 %v1226, 0.01
      %v1259 = vmul.f32 %v1227, 0.01
      %v1260 = vmul.f32 %v1228, 0.01
      %v1261 = vmul.f32 %v1229, 0.01
      %v1262 = vmul.f32 %v1230, 0.01
      %v1263 = vmul.f32 %v1231, 0.01
      %v1264 = vmul.f32 %v1232, 0.01
      %v1265 = vmul.f32 %v1233, 0.01
      %v1266 = vmul.f32 %v1234, 0.01
      %v1267 = vmul.f32 %v1235, 0.01
      %v1268 = vmul.f32 %v1236, 0.01
      %v1269 = vmul.f32 %v1237, 0.01
      %v1270 = vmul.f32 %v1238, 0.01
      %v1271 = vmul.f32 %v1239, 0.01
      %v1272 = vmul.f32 %v1240, 0.01
      %v1273 = vmul.f32 %v1241, 0.01
      %v1274 = vsel %vm1242, %v1226, %v1258
      %v1275 = vsel %vm1243, %v1227, %v1259
      %v1276 = vsel %vm1244, %v1228, %v1260
      %v1277 = vsel %vm1245, %v1229, %v1261
      %v1278 = vsel %vm1246, %v1230, %v1262
      %v1279 = vsel %vm1247, %v1231, %v1263
      %v1280 = vsel %vm1248, %v1232, %v1264
      %v1281 = vsel %vm1249, %v1233, %v1265
      %v1282 = vsel %vm1250, %v1234, %v1266
      %v1283 = vsel %vm1251, %v1235, %v1267
      %v1284 = vsel %vm1252, %v1236, %v1268
      %v1285 = vsel %vm1253, %v1237, %v1269
      %v1286 = vsel %vm1254, %v1238, %v1270
      %v1287 = vsel %vm1255, %v1239, %v1271
      %v1288 = vsel %vm1256, %v1240, %v1272
      %v1289 = vsel %vm1257, %v1241, %v1273
      %vm1290 = vcmask 64512
      %1291 = vst.msk [vmem:[%s192] sm:$0xff] %vm1290, %v1274
      %1292 = vst.msk [vmem:[%s192 + $0x8] sm:$0xff] %vm1290, %v1275
      %1293 = vst.msk [vmem:[%s192 + $0x10] sm:$0xff] %vm1290, %v1276
      %1294 = vst.msk [vmem:[%s192 + $0x18] sm:$0xff] %vm1290, %v1277
      %1295 = vst.msk [vmem:[%s192 + $0x20] sm:$0xff] %vm1290, %v1278
      %1296 = vst.msk [vmem:[%s192 + $0x28] sm:$0xff] %vm1290, %v1279
      %1297 = vst.msk [vmem:[%s192 + $0x30] sm:$0xff] %vm1290, %v1280
      %1298 = vst.msk [vmem:[%s192 + $0x38] sm:$0xff] %vm1290, %v1281
      %1299 = vst.msk [vmem:[%s192 + $0x40] sm:$0xff] %vm1290, %v1282
      %1300 = vst.msk [vmem:[%s192 + $0x48] sm:$0xff] %vm1290, %v1283
      %1301 = vst.msk [vmem:[%s192 + $0x50] sm:$0xff] %vm1290, %v1284
      %1302 = vst.msk [vmem:[%s192 + $0x58] sm:$0xff] %vm1290, %v1285
      %1303 = vst.msk [vmem:[%s192 + $0x60] sm:$0xff] %vm1290, %v1286
      %1304 = vst.msk [vmem:[%s192 + $0x68] sm:$0xff] %vm1290, %v1287
      %1305 = vst.msk [vmem:[%s192 + $0x70] sm:$0xff] %vm1290, %v1288
      %1306 = vst.msk [vmem:[%s192 + $0x78] sm:$0xff] %vm1290, %v1289
      %s1307 = smul.u32 16, %s19
      %p1308 = scmp.lt.s32.totalorder %s18, 1
      %s1309 = scalar_select %p1308, %s18, 1
      %p1310 = scmp.lt.s32.totalorder %s1307, 31
      %s1311 = scalar_select %p1310, %s1307, 31
      %s1312 = smul.addr %s1309, 32
      %s1313 = sadd.s32 %s1311, %s1312
      %s1314 = smul.addr %s1313, 8
      %s1315 = scalar_lea.vmem %s3, %s1314
      // Predicated region
      $region33: #{conv_block_forward.2} parent=31 // pred_check
        %p1316 = pneg %p114
      $region34: #{conv_block_forward.2} parent=31 // pred_check_branch
        %1318 = sbr.rel (%p1316) target = $region36
      $region35: #{conv_block_forward.2} parent=31 // pred_region
        %s1319 = smul.u32 16, %s19
      $region36: #{conv_block_forward.2} parent=31 // pred_fallthru
        _
    $region32: #{conv_block_forward.2} parent=5 // pred_fallthru
      _
    %p1320 = scmp.le.s32.totalorder 2, %s9
    // Predicated region
    $region37: #{conv_block_forward.2} parent=5 // pred_check
      %p1321 = pneg %p1320
    $region38: #{conv_block_forward.2} parent=5 // pred_check_branch
      %1323 = sbr.rel (%p1321) target = $region40
    $region39: #{conv_block_forward.2} parent=5 // pred_region
      %s1324 = ssub.s32 %s9, 2
      // Predicated region
      $region41: #{conv_block_forward.2} parent=39 // pred_check
        %p1325 = pneg %p120
      $region42: #{conv_block_forward.2} parent=39 // pred_check_branch
        %1327 = sbr.rel (%p1325) target = $region44
      $region43: #{conv_block_forward.2} parent=39 // pred_region
        %s1328 = smul.u32 16, %s21
        %p1329 = scmp.lt.s32.totalorder %s20, 1
        %s1330 = scalar_select %p1329, %s20, 1
        %p1331 = scmp.lt.s32.totalorder %s1328, 31
        %s1332 = scalar_select %p1331, %s1328, 31
        %s1333 = smul.addr %s1330, 32
        %s1334 = sadd.s32 %s1332, %s1333
        %s1335 = smul.addr %s1334, 8
        %s1336 = scalar_lea.vmem %s3, %s1335
      $region44: #{conv_block_forward.2} parent=39 // pred_fallthru
        _
    $region40: #{conv_block_forward.2} parent=5 // pred_fallthru
      _
  $region6: #{conv_block_forward.2} parent=0 // loop_footer
    %s13 = sadd.s32 1, %s9
  $region7: #{conv_block_forward.2} parent=0 // loop_footer_branch
    %8 = sbr.rel target = $region3
  $region8: #{conv_block_forward.2} parent=0 // loop_exit
    _

</llo_original>
